<compile_context>
chip_gen: v7x
topology: tpu7x:2x2x1
jax: 0.10.0
libtpu: 0.0.40
codegen_flags: <defaults>
</compile_context>

<pallas_src>
import functools

import numpy as np
import jax
import jax.numpy as jnp
from jax.experimental import pallas as pl
from jax.experimental.pallas import tpu as pltpu

EXPANSION = 4
BN_EPS = 1e-5


def _round_up(v, m):
    return ((v + m - 1) // m) * m


def _vmem_capacity_bytes():
    try:
        return int(pltpu.get_tpu_info().vmem_capacity_bytes)
    except Exception:
        return 64 << 20   # conservative (v7x per-TC)


# ---------------------------------------------------------------------------
# Fused kernel body
#   x_ref    : (rows, cin)  bf16   padded (and phase-decomposed) block input
#   mask_ref : (rows, 1)    f32    1.0 at real image pixels, 0.0 at pad pixels
#   g_ref    : (rows, cmid) bf16   VMEM scratch holding y1 (stage-1 output)
#   o_ref    : (p, cexp)    bf16   output rows (includes garbage columns that
#                                  the wrapper slices off)
# ---------------------------------------------------------------------------
def _stages_1_2(x_ref, mask_ref, w1_ref, b1_ref, w2_ref, b2_ref, g_ref, taps, p):
    # stage 1: 1x1 conv + BN + ReLU over every padded pixel, masked so pad
    # pixels are exactly zero (true zero padding for the 3x3 conv).
    y1 = jnp.dot(x_ref[...], w1_ref[...], preferred_element_type=jnp.float32)
    y1 = jnp.maximum(y1 + b1_ref[...], 0.0) * mask_ref[...]
    g_ref[...] = y1.astype(jnp.bfloat16)
    # stage 2: 3x3 conv (stride folded into the tap->row-offset map) as 9 MXU
    # dots over contiguous row-windows of the VMEM-resident y1; f32 accumulate.
    acc = jnp.dot(g_ref[pl.ds(taps[0], p), :], w2_ref[0],
                  preferred_element_type=jnp.float32)
    for t in range(1, len(taps)):
        acc = acc + jnp.dot(g_ref[pl.ds(taps[t], p), :], w2_ref[t],
                            preferred_element_type=jnp.float32)
    return jnp.maximum(acc + b2_ref[...], 0.0).astype(jnp.bfloat16)


def _block_kernel_proj(x_ref, mask_ref, w1_ref, b1_ref, w2_ref, b2_ref,
                       w3_ref, b3_ref, wsc_ref, o_ref, g_ref, *,
                       taps, sc_off, p):
    y2 = _stages_1_2(x_ref, mask_ref, w1_ref, b1_ref, w2_ref, b2_ref,
                     g_ref, taps, p)
    out = jnp.dot(y2, w3_ref[...], preferred_element_type=jnp.float32)
    # projection shortcut: its GEMM input is just another tap of x_ref;
    # b3_ref already contains (BN3 bias + shortcut-BN bias).
    out = out + jnp.dot(x_ref[pl.ds(sc_off, p), :], wsc_ref[...],
                        preferred_element_type=jnp.float32)
    out = out + b3_ref[...]
    o_ref[...] = jnp.maximum(out, 0.0).astype(o_ref.dtype)


def _block_kernel_id(x_ref, mask_ref, w1_ref, b1_ref, w2_ref, b2_ref,
                     w3_ref, b3_ref, o_ref, g_ref, *, taps, sc_off, p):
    y2 = _stages_1_2(x_ref, mask_ref, w1_ref, b1_ref, w2_ref, b2_ref,
                     g_ref, taps, p)
    out = jnp.dot(y2, w3_ref[...], preferred_element_type=jnp.float32)
    out = out + b3_ref[...]
    # identity residual: the block input is already resident as a tap of x_ref
    out = out + x_ref[pl.ds(sc_off, p), :].astype(jnp.float32)
    o_ref[...] = jnp.maximum(out, 0.0).astype(o_ref.dtype)


def _vmem_limit_bytes(rows, cin, cmid, cexp, p):
    bx = rows * cin * 2                                   # x block (bf16)
    bmask = _round_up(rows, 8) * 128 * 4                  # (rows, 1) f32 lane tiles
    bg = rows * cmid * 2                                  # y1 scratch (bf16)
    bo = p * cexp * 2                                     # output block (bf16)
    bw = (cin * cmid + 9 * cmid * cmid + cmid * cexp + cin * cexp) * 2
    btmp = (rows * cmid + 2 * p * cexp + p * cmid) * 4    # f32 temporaries
    est = 2 * bx + bmask + bg + 2 * bo + bw + btmp + (4 << 20)
    return int(min(max(est, 16 << 20), int(_vmem_capacity_bytes() * 0.9)))


def fused_bottleneck(x_flat, mask, prep, *, taps, sc_off, p):
    n, rows, cin = x_flat.shape
    cmid = prep['w1'].shape[1]
    cexp = prep['w3'].shape[1]
    has_proj = 'wsc' in prep

    in_specs = [
        pl.BlockSpec((None, rows, cin), lambda b: (b, 0, 0)),
        pl.BlockSpec((rows, 1), lambda b: (0, 0)),
        pl.BlockSpec((cin, cmid), lambda b: (0, 0)),
        pl.BlockSpec((1, cmid), lambda b: (0, 0)),
        pl.BlockSpec((9, cmid, cmid), lambda b: (0, 0, 0)),
        pl.BlockSpec((1, cmid), lambda b: (0, 0)),
        pl.BlockSpec((cmid, cexp), lambda b: (0, 0)),
        pl.BlockSpec((1, cexp), lambda b: (0, 0)),
    ]
    args = [x_flat, mask, prep['w1'], prep['b1'], prep['w2'], prep['b2'],
            prep['w3'], prep['b3']]
    if has_proj:
        in_specs.append(pl.BlockSpec((cin, cexp), lambda b: (0, 0)))
        args.append(prep['wsc'])
        kernel = functools.partial(_block_kernel_proj, taps=taps,
                                   sc_off=sc_off, p=p)
    else:
        kernel = functools.partial(_block_kernel_id, taps=taps,
                                   sc_off=sc_off, p=p)

    return pl.pallas_call(
        kernel,
        out_shape=jax.ShapeDtypeStruct((n, p, cexp), jnp.bfloat16),
        grid_spec=pltpu.PrefetchScalarGridSpec(
            num_scalar_prefetch=0,
            grid=(n,),
            in_specs=in_specs,
            out_specs=pl.BlockSpec((None, p, cexp), lambda b: (b, 0, 0)),
            scratch_shapes=[pltpu.VMEM((rows, cmid), jnp.bfloat16)],
        ),
        compiler_params=pltpu.CompilerParams(
            dimension_semantics=("parallel",),
            vmem_limit_bytes=_vmem_limit_bytes(rows, cin, cmid, cexp, p)),
    )(*args)


# ---------------------------------------------------------------------------
# One-time parameter preparation (eval-mode BN folding, GEMM layout, bf16)
# ---------------------------------------------------------------------------
def _fold_bn(bn):
    gamma, beta, mean, var = bn
    scale = gamma / jnp.sqrt(var + BN_EPS)
    return scale, beta - mean * scale


def prepare_params(params, stride):
    cmid, cin = params['w1'].shape[0], params['w1'].shape[1]
    cexp = params['w3'].shape[0]

    s1, b1 = _fold_bn(params['bn1'])
    s2, b2 = _fold_bn(params['bn2'])
    s3, b3 = _fold_bn(params['bn3'])

    w1m = jnp.transpose(params['w1'][:, :, 0, 0], (1, 0)) * s1[None, :]
    w3m = jnp.transpose(params['w3'][:, :, 0, 0], (1, 0)) * s3[None, :]
    # 3x3 conv -> 9 per-tap (Cin, Cout) matrices, BN scale folded in.
    w2t = jnp.transpose(params['w2'], (2, 3, 1, 0)) * s2[None, None, None, :]
    w2taps = w2t.reshape(9, cmid, cmid)            # tap order (dy, dx) row-major

    has_proj = (stride != 1) or (cin != cexp)
    if has_proj:
        ssc, bsc = _fold_bn(params['bnsc'])
        wscm = jnp.transpose(params['wsc'][:, :, 0, 0], (1, 0)) * ssc[None, :]
        b3 = b3 + bsc                              # pre-summed epilogue bias

    prep = {
        'w1': w1m.astype(jnp.bfloat16),
        'b1': b1.reshape(1, cmid).astype(jnp.float32),
        'w2': w2taps.astype(jnp.bfloat16),
        'b2': b2.reshape(1, cmid).astype(jnp.float32),
        'w3': w3m.astype(jnp.bfloat16),
        'b3': b3.reshape(1, cexp).astype(jnp.float32),
    }
    if has_proj:
        prep['wsc'] = wscm.astype(jnp.bfloat16)
    return prep


# ---------------------------------------------------------------------------
# Glue: build the padded / phase-decomposed flat operand, mask and tap offsets
# ---------------------------------------------------------------------------
def _build_operand(x, stride):
    n, h, w, c = x.shape
    if stride == 1:
        hf, wf = h + 2, w + 2
        ho, wo = h, w
        p = ho * wf
        max_off = 2 * wf + 2
        lf = _round_up(max(p + max_off, hf * wf), 8)
        xp = jnp.pad(x, ((0, 0), (1, 1), (1, 1), (0, 0)))
        xf = xp.reshape(n, hf * wf, c)
        xf = jnp.pad(xf, ((0, 0), (0, lf - hf * wf), (0, 0)))
        taps = tuple(dy * wf + dx for dy in range(3) for dx in range(3))
        sc_off = wf + 1                      # block input at output pixel
        idx = np.arange(lf)
        a, b = idx // wf, idx % wf
        valid = (a >= 1) & (a <= h) & (b >= 1) & (b <= w) & (idx < hf * wf)
        mask = valid.astype(np.float32).reshape(lf, 1)
    else:  # stride == 2: 2x2 phase decomposition of the padded input
        hp = h + 2 + (h % 2)
        wp = w + 2 + (w % 2)
        hf, wf = hp // 2, wp // 2
        ho, wo = (h - 1) // 2 + 1, (w - 1) // 2 + 1
        p = ho * wf
        max_off = wf + 1
        lf = _round_up(max(p + max_off, hf * wf), 8)
        xp = jnp.pad(x, ((0, 0), (1, hp - h - 1), (1, wp - w - 1), (0, 0)))
        xph = xp.reshape(n, hf, 2, wf, 2, c).transpose(0, 2, 4, 1, 3, 5)
        xph = xph.reshape(n, 4, hf * wf, c)
        xph = jnp.pad(xph, ((0, 0), (0, 0), (0, lf - hf * wf), (0, 0)))
        xf = xph.reshape(n, 4 * lf, c)
        taps = tuple(((dy % 2) * 2 + (dx % 2)) * lf + (dy // 2) * wf + (dx // 2)
                     for dy in range(3) for dx in range(3))
        sc_off = 3 * lf                      # phase (1,1), coarse offset 0
        idx = np.arange(lf)
        a, b = idx // wf, idx % wf
        phase_masks = []
        for py in range(2):
            for px in range(2):
                yy = 2 * a + py - 1
                xx = 2 * b + px - 1
                v = (yy >= 0) & (yy < h) & (xx >= 0) & (xx < w) & (idx < hf * wf)
                phase_masks.append(v)
        mask = np.concatenate(phase_masks).astype(np.float32).reshape(4 * lf, 1)
    return xf, mask, taps, sc_off, p, ho, wo, wf


# ---------------------------------------------------------------------------
# BottleNeck forward (Pallas)
# ---------------------------------------------------------------------------
@functools.partial(jax.jit, static_argnums=(2,))
def bottleneck_forward(x_nchw, prep, stride):
    x = jnp.transpose(x_nchw, (0, 2, 3, 1)).astype(jnp.bfloat16)   # NCHW->NHWC
    n = x.shape[0]
    cexp = prep['w3'].shape[1]

    x_flat, mask, taps, sc_off, p, ho, wo, wf = _build_operand(x, stride)
    out_flat = fused_bottleneck(x_flat, mask, prep,
                                taps=taps, sc_off=sc_off, p=p)

    out = out_flat.reshape(n, ho, wf, cexp)[:, :, :wo, :]   # drop garbage cols
    return jnp.transpose(out, (0, 3, 1, 2)).astype(x_nchw.dtype)


# ---------------------------------------------------------------------------
# Pure-JAX reference (mirrors the PyTorch forward, eval-mode BN, f32)
# ---------------------------------------------------------------------------
def bottleneck_ref(x, p, stride):
    def conv(x, w, s, pad):
        return jax.lax.conv_general_dilated(
            x, w, (s, s), [(pad, pad), (pad, pad)],
            dimension_numbers=('NCHW', 'OIHW', 'NCHW'))

    def bn(x, bnp):
        g, b, m, v = bnp
        inv = g / jnp.sqrt(v + BN_EPS)
        return x * inv[None, :, None, None] + (b - m * inv)[None, :, None, None]

    y = jax.nn.relu(bn(conv(x, p['w1'], 1, 0), p['bn1']))
    y = jax.nn.relu(bn(conv(y, p['w2'], stride, 1), p['bn2']))
    y = bn(conv(y, p['w3'], 1, 0), p['bn3'])
    c_exp = p['w3'].shape[0]
    if stride != 1 or x.shape[1] != c_exp:
        sc = bn(conv(x, p['wsc'], stride, 0), p['bnsc'])
    else:
        sc = x
    return jax.nn.relu(y + sc)


# ---------------------------------------------------------------------------
# Deterministic parameter init + tests
# ---------------------------------------------------------------------------
def make_params(key, in_channels, out_channels):
    c_exp = out_channels * EXPANSION
    ks = jax.random.split(key, 8)

    def bn_params(k, c):
        k1, k2, k3, k4 = jax.random.split(k, 4)
        gamma = jax.random.uniform(k1, (c,), jnp.float32, 0.5, 1.5)
        beta = 0.1 * jax.random.normal(k2, (c,), jnp.float32)
        mean = 0.1 * jax.random.normal(k3, (c,), jnp.float32)
        var = jax.random.uniform(k4, (c,), jnp.float32, 0.5, 1.5)
        return (gamma, beta, mean, var)

    return {
        'w1': 0.2 * jax.random.normal(ks[0], (out_channels, in_channels, 1, 1), jnp.float32),
        'bn1': bn_params(ks[1], out_channels),
        'w2': 0.2 * jax.random.normal(ks[2], (out_channels, out_channels, 3, 3), jnp.float32),
        'bn2': bn_params(ks[3], out_channels),
        'w3': 0.2 * jax.random.normal(ks[4], (c_exp, out_channels, 1, 1), jnp.float32),
        'bn3': bn_params(ks[5], c_exp),
        'wsc': 0.2 * jax.random.normal(ks[6], (c_exp, in_channels, 1, 1), jnp.float32),
        'bnsc': bn_params(ks[7], c_exp),
    }


def _run_case(key, in_channels, out_channels, stride, n, h, w, label):
    kx, kp = jax.random.split(key)
    x = jax.random.normal(kx, (n, in_channels, h, w), jnp.float32)
    params = make_params(kp, in_channels, out_channels)
    prep = prepare_params(params, stride)

    out = jax.block_until_ready(bottleneck_forward(x, prep, stride))
    ref = jax.block_until_ready(bottleneck_ref(x, params, stride))

    assert out.shape == ref.shape, (label, out.shape, ref.shape)
    max_err = float(jnp.max(jnp.abs(out - ref)))
    scale = float(jnp.max(jnp.abs(ref)))
    # bf16 GEMM inputs / bf16 output with f32 accumulation -> bf16-scaled tol.
    assert max_err <= 5e-2 * scale + 5e-2, (label, max_err, scale)


if __name__ == "__main__":
    key = jax.random.PRNGKey(0)
    k1, k2, k3 = jax.random.split(key, 3)

    # Down-sampling block: stride 2, projection shortcut, odd H (extra pad row).
    _run_case(k1, 32, 16, 2, 2, 15, 16, "stride2_projection")
    # Identity block: stride 1, in_channels == out_channels * expansion.
    _run_case(k2, 64, 16, 1, 2, 14, 14, "stride1_identity")
    # Channel-changing block at stride 1: projection shortcut, non-square.
    _run_case(k3, 24, 16, 1, 1, 8, 12, "stride1_projection")

    print("KERNEL_OK")
</pallas_src>

<mosaic_0001>
module attributes {stable_mosaic.version = 11 : i64} {
  func.func @_block_kernel_proj(%arg0: i32, %arg1: memref<1x352x32xbf16, #tpu.memory_space<vmem>>, %arg2: memref<352x1xf32, #tpu.memory_space<vmem>>, %arg3: memref<32x16xbf16, #tpu.memory_space<vmem>>, %arg4: memref<1x16xf32, #tpu.memory_space<vmem>>, %arg5: memref<9x16x16xbf16, #tpu.memory_space<vmem>>, %arg6: memref<1x16xf32, #tpu.memory_space<vmem>>, %arg7: memref<16x64xbf16, #tpu.memory_space<vmem>>, %arg8: memref<1x64xf32, #tpu.memory_space<vmem>>, %arg9: memref<32x64xbf16, #tpu.memory_space<vmem>>, %arg10: memref<1x72x64xbf16, #tpu.memory_space<vmem>>, %arg11: memref<352x16xbf16, #tpu.memory_space<vmem>>) attributes {dimension_semantics = [#tpu.dimension_semantics<parallel>], iteration_bounds = array<i64: 2>, scalar_prefetch = 0 : i64, scratch_operands = 1 : i64, tpu.core_type = #tpu.core_type<tc>, window_params = [{transform_indices = @transform_0, window_bounds = array<i64: 1, 352, 32>}, {pipeline_mode = #tpu.pipeline_mode<synchronous>, transform_indices = @transform_1, window_bounds = array<i64: 352, 1>}, {pipeline_mode = #tpu.pipeline_mode<synchronous>, transform_indices = @transform_2, window_bounds = array<i64: 32, 16>}, {pipeline_mode = #tpu.pipeline_mode<synchronous>, transform_indices = @transform_3, window_bounds = array<i64: 1, 16>}, {pipeline_mode = #tpu.pipeline_mode<synchronous>, transform_indices = @transform_4, window_bounds = array<i64: 9, 16, 16>}, {pipeline_mode = #tpu.pipeline_mode<synchronous>, transform_indices = @transform_5, window_bounds = array<i64: 1, 16>}, {pipeline_mode = #tpu.pipeline_mode<synchronous>, transform_indices = @transform_6, window_bounds = array<i64: 16, 64>}, {pipeline_mode = #tpu.pipeline_mode<synchronous>, transform_indices = @transform_7, window_bounds = array<i64: 1, 64>}, {pipeline_mode = #tpu.pipeline_mode<synchronous>, transform_indices = @transform_8, window_bounds = array<i64: 32, 64>}, {transform_indices = @transform_9, window_bounds = array<i64: 1, 72, 64>}]} {
    %c0 = arith.constant 0 : index
    %c0_0 = arith.constant 0 : index
    %c0_1 = arith.constant 0 : index
    %0 = vector.load %arg1[%c0, %c0_0, %c0_1] : memref<1x352x32xbf16, #tpu.memory_space<vmem>>, vector<1x352x32xbf16>
    %1 = vector.shape_cast %0 : vector<1x352x32xbf16> to vector<352x32xbf16>
    %c0_2 = arith.constant 0 : index
    %c0_3 = arith.constant 0 : index
    %2 = vector.load %arg3[%c0_2, %c0_3] : memref<32x16xbf16, #tpu.memory_space<vmem>>, vector<32x16xbf16>
    %cst = arith.constant dense<0.000000e+00> : vector<352x16xf32>
    %3 = tpu.matmul %1, %2, %cst {dimension_numbers = #tpu.dot_dimension_numbers<[1], [0], [0], [1], [0, 0, 1, 1], [], []>} : vector<352x32xbf16>, vector<32x16xbf16>, vector<352x16xf32> -> vector<352x16xf32>
    %c0_4 = arith.constant 0 : index
    %c0_5 = arith.constant 0 : index
    %4 = vector.load %arg4[%c0_4, %c0_5] : memref<1x16xf32, #tpu.memory_space<vmem>>, vector<1x16xf32>
    %5 = vector.broadcast %4 : vector<1x16xf32> to vector<352x16xf32>
    %6 = arith.addf %3, %5 : vector<352x16xf32>
    %cst_6 = arith.constant 0.000000e+00 : f32
    %7 = vector.broadcast %cst_6 : f32 to vector<352x16xf32>
    %8 = arith.maximumf %6, %7 : vector<352x16xf32>
    %c0_7 = arith.constant 0 : index
    %c0_8 = arith.constant 0 : index
    %9 = vector.load %arg2[%c0_7, %c0_8] : memref<352x1xf32, #tpu.memory_space<vmem>>, vector<352x1xf32>
    %10 = vector.broadcast %9 : vector<352x1xf32> to vector<352x16xf32>
    %11 = arith.mulf %8, %10 : vector<352x16xf32>
    %12 = arith.truncf %11 : vector<352x16xf32> to vector<352x16xbf16>
    %c0_9 = arith.constant 0 : index
    %c0_10 = arith.constant 0 : index
    %13 = vector.load %arg11[%c0_9, %c0_10] : memref<352x16xbf16, #tpu.memory_space<vmem>>, vector<352x16xbf16>
    tpu.vector_store %arg11[%c0_9, %c0_10], %12 {strides = array<i32>} : memref<352x16xbf16, #tpu.memory_space<vmem>>, vector<352x16xbf16>,
    %c0_11 = arith.constant 0 : index
    %c0_12 = arith.constant 0 : index
    %14 = vector.load %arg11[%c0_11, %c0_12] : memref<352x16xbf16, #tpu.memory_space<vmem>>, vector<72x16xbf16>
    %c0_13 = arith.constant 0 : index
    %c0_14 = arith.constant 0 : index
    %c0_15 = arith.constant 0 : index
    %15 = vector.load %arg5[%c0_13, %c0_14, %c0_15] : memref<9x16x16xbf16, #tpu.memory_space<vmem>>, vector<1x16x16xbf16>
    %16 = vector.shape_cast %15 : vector<1x16x16xbf16> to vector<16x16xbf16>
    %cst_16 = arith.constant dense<0.000000e+00> : vector<72x16xf32>
    %17 = tpu.matmul %14, %16, %cst_16 {dimension_numbers = #tpu.dot_dimension_numbers<[1], [0], [0], [1], [0, 0, 1, 1], [], []>} : vector<72x16xbf16>, vector<16x16xbf16>, vector<72x16xf32> -> vector<72x16xf32>
    %c88 = arith.constant 88 : index
    %c0_17 = arith.constant 0 : index
    %18 = vector.load %arg11[%c88, %c0_17] : memref<352x16xbf16, #tpu.memory_space<vmem>>, vector<72x16xbf16>
    %c1 = arith.constant 1 : index
    %c0_18 = arith.constant 0 : index
    %c0_19 = arith.constant 0 : index
    %19 = vector.load %arg5[%c1, %c0_18, %c0_19] : memref<9x16x16xbf16, #tpu.memory_space<vmem>>, vector<1x16x16xbf16>
    %20 = vector.shape_cast %19 : vector<1x16x16xbf16> to vector<16x16xbf16>
    %cst_20 = arith.constant dense<0.000000e+00> : vector<72x16xf32>
    %21 = tpu.matmul %18, %20, %cst_20 {dimension_numbers = #tpu.dot_dimension_numbers<[1], [0], [0], [1], [0, 0, 1, 1], [], []>} : vector<72x16xbf16>, vector<16x16xbf16>, vector<72x16xf32> -> vector<72x16xf32>
    %22 = arith.addf %17, %21 : vector<72x16xf32>
    %c1_21 = arith.constant 1 : index
    %c0_22 = arith.constant 0 : index
    %23 = vector.load %arg11[%c1_21, %c0_22] : memref<352x16xbf16, #tpu.memory_space<vmem>>, vector<72x16xbf16>
    %c2 = arith.constant 2 : index
    %c0_23 = arith.constant 0 : index
    %c0_24 = arith.constant 0 : index
    %24 = vector.load %arg5[%c2, %c0_23, %c0_24] : memref<9x16x16xbf16, #tpu.memory_space<vmem>>, vector<1x16x16xbf16>
    %25 = vector.shape_cast %24 : vector<1x16x16xbf16> to vector<16x16xbf16>
    %cst_25 = arith.constant dense<0.000000e+00> : vector<72x16xf32>
    %26 = tpu.matmul %23, %25, %cst_25 {dimension_numbers = #tpu.dot_dimension_numbers<[1], [0], [0], [1], [0, 0, 1, 1], [], []>} : vector<72x16xbf16>, vector<16x16xbf16>, vector<72x16xf32> -> vector<72x16xf32>
    %27 = arith.addf %22, %26 : vector<72x16xf32>
    %c176 = arith.constant 176 : index
    %c0_26 = arith.constant 0 : index
    %28 = vector.load %arg11[%c176, %c0_26] : memref<352x16xbf16, #tpu.memory_space<vmem>>, vector<72x16xbf16>
    %c3 = arith.constant 3 : index
    %c0_27 = arith.constant 0 : index
    %c0_28 = arith.constant 0 : index
    %29 = vector.load %arg5[%c3, %c0_27, %c0_28] : memref<9x16x16xbf16, #tpu.memory_space<vmem>>, vector<1x16x16xbf16>
    %30 = vector.shape_cast %29 : vector<1x16x16xbf16> to vector<16x16xbf16>
    %cst_29 = arith.constant dense<0.000000e+00> : vector<72x16xf32>
    %31 = tpu.matmul %28, %30, %cst_29 {dimension_numbers = #tpu.dot_dimension_numbers<[1], [0], [0], [1], [0, 0, 1, 1], [], []>} : vector<72x16xbf16>, vector<16x16xbf16>, vector<72x16xf32> -> vector<72x16xf32>
    %32 = arith.addf %27, %31 : vector<72x16xf32>
    %c264 = arith.constant 264 : index
    %c0_30 = arith.constant 0 : index
    %33 = vector.load %arg11[%c264, %c0_30] : memref<352x16xbf16, #tpu.memory_space<vmem>>, vector<72x16xbf16>
    %c4 = arith.constant 4 : index
    %c0_31 = arith.constant 0 : index
    %c0_32 = arith.constant 0 : index
    %34 = vector.load %arg5[%c4, %c0_31, %c0_32] : memref<9x16x16xbf16, #tpu.memory_space<vmem>>, vector<1x16x16xbf16>
    %35 = vector.shape_cast %34 : vector<1x16x16xbf16> to vector<16x16xbf16>
    %cst_33 = arith.constant dense<0.000000e+00> : vector<72x16xf32>
    %36 = tpu.matmul %33, %35, %cst_33 {dimension_numbers = #tpu.dot_dimension_numbers<[1], [0], [0], [1], [0, 0, 1, 1], [], []>} : vector<72x16xbf16>, vector<16x16xbf16>, vector<72x16xf32> -> vector<72x16xf32>
    %37 = arith.addf %32, %36 : vector<72x16xf32>
    %c177 = arith.constant 177 : index
    %c0_34 = arith.constant 0 : index
    %38 = vector.load %arg11[%c177, %c0_34] : memref<352x16xbf16, #tpu.memory_space<vmem>>, vector<72x16xbf16>
    %c5 = arith.constant 5 : index
    %c0_35 = arith.constant 0 : index
    %c0_36 = arith.constant 0 : index
    %39 = vector.load %arg5[%c5, %c0_35, %c0_36] : memref<9x16x16xbf16, #tpu.memory_space<vmem>>, vector<1x16x16xbf16>
    %40 = vector.shape_cast %39 : vector<1x16x16xbf16> to vector<16x16xbf16>
    %cst_37 = arith.constant dense<0.000000e+00> : vector<72x16xf32>
    %41 = tpu.matmul %38, %40, %cst_37 {dimension_numbers = #tpu.dot_dimension_numbers<[1], [0], [0], [1], [0, 0, 1, 1], [], []>} : vector<72x16xbf16>, vector<16x16xbf16>, vector<72x16xf32> -> vector<72x16xf32>
    %42 = arith.addf %37, %41 : vector<72x16xf32>
    %c9 = arith.constant 9 : index
    %c0_38 = arith.constant 0 : index
    %43 = vector.load %arg11[%c9, %c0_38] : memref<352x16xbf16, #tpu.memory_space<vmem>>, vector<72x16xbf16>
    %c6 = arith.constant 6 : index
    %c0_39 = arith.constant 0 : index
    %c0_40 = arith.constant 0 : index
    %44 = vector.load %arg5[%c6, %c0_39, %c0_40] : memref<9x16x16xbf16, #tpu.memory_space<vmem>>, vector<1x16x16xbf16>
    %45 = vector.shape_cast %44 : vector<1x16x16xbf16> to vector<16x16xbf16>
    %cst_41 = arith.constant dense<0.000000e+00> : vector<72x16xf32>
    %46 = tpu.matmul %43, %45, %cst_41 {dimension_numbers = #tpu.dot_dimension_numbers<[1], [0], [0], [1], [0, 0, 1, 1], [], []>} : vector<72x16xbf16>, vector<16x16xbf16>, vector<72x16xf32> -> vector<72x16xf32>
    %47 = arith.addf %42, %46 : vector<72x16xf32>
    %c97 = arith.constant 97 : index
    %c0_42 = arith.constant 0 : index
    %48 = vector.load %arg11[%c97, %c0_42] : memref<352x16xbf16, #tpu.memory_space<vmem>>, vector<72x16xbf16>
    %c7 = arith.constant 7 : index
    %c0_43 = arith.constant 0 : index
    %c0_44 = arith.constant 0 : index
    %49 = vector.load %arg5[%c7, %c0_43, %c0_44] : memref<9x16x16xbf16, #tpu.memory_space<vmem>>, vector<1x16x16xbf16>
    %50 = vector.shape_cast %49 : vector<1x16x16xbf16> to vector<16x16xbf16>
    %cst_45 = arith.constant dense<0.000000e+00> : vector<72x16xf32>
    %51 = tpu.matmul %48, %50, %cst_45 {dimension_numbers = #tpu.dot_dimension_numbers<[1], [0], [0], [1], [0, 0, 1, 1], [], []>} : vector<72x16xbf16>, vector<16x16xbf16>, vector<72x16xf32> -> vector<72x16xf32>
    %52 = arith.addf %47, %51 : vector<72x16xf32>
    %c10 = arith.constant 10 : index
    %c0_46 = arith.constant 0 : index
    %53 = vector.load %arg11[%c10, %c0_46] : memref<352x16xbf16, #tpu.memory_space<vmem>>, vector<72x16xbf16>
    %c8 = arith.constant 8 : index
    %c0_47 = arith.constant 0 : index
    %c0_48 = arith.constant 0 : index
    %54 = vector.load %arg5[%c8, %c0_47, %c0_48] : memref<9x16x16xbf16, #tpu.memory_space<vmem>>, vector<1x16x16xbf16>
    %55 = vector.shape_cast %54 : vector<1x16x16xbf16> to vector<16x16xbf16>
    %cst_49 = arith.constant dense<0.000000e+00> : vector<72x16xf32>
    %56 = tpu.matmul %53, %55, %cst_49 {dimension_numbers = #tpu.dot_dimension_numbers<[1], [0], [0], [1], [0, 0, 1, 1], [], []>} : vector<72x16xbf16>, vector<16x16xbf16>, vector<72x16xf32> -> vector<72x16xf32>
    %57 = arith.addf %52, %56 : vector<72x16xf32>
    %c0_50 = arith.constant 0 : index
    %c0_51 = arith.constant 0 : index
    %58 = vector.load %arg6[%c0_50, %c0_51] : memref<1x16xf32, #tpu.memory_space<vmem>>, vector<1x16xf32>
    %59 = vector.broadcast %58 : vector<1x16xf32> to vector<72x16xf32>
    %60 = arith.addf %57, %59 : vector<72x16xf32>
    %cst_52 = arith.constant 0.000000e+00 : f32
    %61 = vector.broadcast %cst_52 : f32 to vector<72x16xf32>
    %62 = arith.maximumf %60, %61 : vector<72x16xf32>
    %63 = arith.truncf %62 : vector<72x16xf32> to vector<72x16xbf16>
    %c0_53 = arith.constant 0 : index
    %c0_54 = arith.constant 0 : index
    %64 = vector.load %arg7[%c0_53, %c0_54] : memref<16x64xbf16, #tpu.memory_space<vmem>>, vector<16x64xbf16>
    %cst_55 = arith.constant dense<0.000000e+00> : vector<72x64xf32>
    %65 = tpu.matmul %63, %64, %cst_55 {dimension_numbers = #tpu.dot_dimension_numbers<[1], [0], [0], [1], [0, 0, 1, 1], [], []>} : vector<72x16xbf16>, vector<16x64xbf16>, vector<72x64xf32> -> vector<72x64xf32>
    %c0_56 = arith.constant 0 : index
    %c264_57 = arith.constant 264 : index
    %c0_58 = arith.constant 0 : index
    %66 = vector.load %arg1[%c0_56, %c264_57, %c0_58] : memref<1x352x32xbf16, #tpu.memory_space<vmem>>, vector<1x72x32xbf16>
    %67 = vector.shape_cast %66 : vector<1x72x32xbf16> to vector<72x32xbf16>
    %c0_59 = arith.constant 0 : index
    %c0_60 = arith.constant 0 : index
    %68 = vector.load %arg9[%c0_59, %c0_60] : memref<32x64xbf16, #tpu.memory_space<vmem>>, vector<32x64xbf16>
    %cst_61 = arith.constant dense<0.000000e+00> : vector<72x64xf32>
    %69 = tpu.matmul %67, %68, %cst_61 {dimension_numbers = #tpu.dot_dimension_numbers<[1], [0], [0], [1], [0, 0, 1, 1], [], []>} : vector<72x32xbf16>, vector<32x64xbf16>, vector<72x64xf32> -> vector<72x64xf32>
    %70 = arith.addf %65, %69 : vector<72x64xf32>
    %c0_62 = arith.constant 0 : index
    %c0_63 = arith.constant 0 : index
    %71 = vector.load %arg8[%c0_62, %c0_63] : memref<1x64xf32, #tpu.memory_space<vmem>>, vector<1x64xf32>
    %72 = vector.broadcast %71 : vector<1x64xf32> to vector<72x64xf32>
    %73 = arith.addf %70, %72 : vector<72x64xf32>
    %cst_64 = arith.constant 0.000000e+00 : f32
    %74 = vector.broadcast %cst_64 : f32 to vector<72x64xf32>
    %75 = arith.maximumf %73, %74 : vector<72x64xf32>
    %76 = arith.truncf %75 : vector<72x64xf32> to vector<72x64xbf16>
    %c0_65 = arith.constant 0 : index
    %c0_66 = arith.constant 0 : index
    %c0_67 = arith.constant 0 : index
    %77 = vector.load %arg10[%c0_65, %c0_66, %c0_67] : memref<1x72x64xbf16, #tpu.memory_space<vmem>>, vector<1x72x64xbf16>
    %78 = vector.shape_cast %77 : vector<1x72x64xbf16> to vector<72x64xbf16>
    %79 = vector.shape_cast %76 : vector<72x64xbf16> to vector<1x72x64xbf16>
    tpu.vector_store %arg10[%c0_65, %c0_66, %c0_67], %79 {strides = array<i32>} : memref<1x72x64xbf16, #tpu.memory_space<vmem>>, vector<1x72x64xbf16>,
    return
  }
  func.func @transform_0(%arg0: i32) -> (i32, i32, i32) {
    %c0_i32 = arith.constant 0 : i32
    %c0_i32_0 = arith.constant 0 : i32
    %c0_i32_1 = arith.constant 0 : i32
    return %arg0, %c0_i32, %c0_i32_0 : i32, i32, i32
  }
  func.func @transform_1(%arg0: i32) -> (i32, i32) {
    %c0_i32 = arith.constant 0 : i32
    %c0_i32_0 = arith.constant 0 : i32
    %c0_i32_1 = arith.constant 0 : i32
    return %c0_i32, %c0_i32_0 : i32, i32
  }
  func.func @transform_2(%arg0: i32) -> (i32, i32) {
    %c0_i32 = arith.constant 0 : i32
    %c0_i32_0 = arith.constant 0 : i32
    %c0_i32_1 = arith.constant 0 : i32
    return %c0_i32, %c0_i32_0 : i32, i32
  }
  func.func @transform_3(%arg0: i32) -> (i32, i32) {
    %c0_i32 = arith.constant 0 : i32
    %c0_i32_0 = arith.constant 0 : i32
    %c0_i32_1 = arith.constant 0 : i32
    return %c0_i32, %c0_i32_0 : i32, i32
  }
  func.func @transform_4(%arg0: i32) -> (i32, i32, i32) {
    %c0_i32 = arith.constant 0 : i32
    %c0_i32_0 = arith.constant 0 : i32
    %c0_i32_1 = arith.constant 0 : i32
    %c0_i32_2 = arith.constant 0 : i32
    return %c0_i32, %c0_i32_0, %c0_i32_1 : i32, i32, i32
  }
  func.func @transform_5(%arg0: i32) -> (i32, i32) {
    %c0_i32 = arith.constant 0 : i32
    %c0_i32_0 = arith.constant 0 : i32
    %c0_i32_1 = arith.constant 0 : i32
    return %c0_i32, %c0_i32_0 : i32, i32
  }
  func.func @transform_6(%arg0: i32) -> (i32, i32) {
    %c0_i32 = arith.constant 0 : i32
    %c0_i32_0 = arith.constant 0 : i32
    %c0_i32_1 = arith.constant 0 : i32
    return %c0_i32, %c0_i32_0 : i32, i32
  }
  func.func @transform_7(%arg0: i32) -> (i32, i32) {
    %c0_i32 = arith.constant 0 : i32
    %c0_i32_0 = arith.constant 0 : i32
    %c0_i32_1 = arith.constant 0 : i32
    return %c0_i32, %c0_i32_0 : i32, i32
  }
  func.func @transform_8(%arg0: i32) -> (i32, i32) {
    %c0_i32 = arith.constant 0 : i32
    %c0_i32_0 = arith.constant 0 : i32
    %c0_i32_1 = arith.constant 0 : i32
    return %c0_i32, %c0_i32_0 : i32, i32
  }
  func.func @transform_9(%arg0: i32) -> (i32, i32, i32) {
    %c0_i32 = arith.constant 0 : i32
    %c0_i32_0 = arith.constant 0 : i32
    %c0_i32_1 = arith.constant 0 : i32
    return %arg0, %c0_i32, %c0_i32_0 : i32, i32, i32
  }
}

</mosaic_0001>

<llo_original>
// kernel: bottleneck_forward.1
$region0: #{bottleneck_forward.1}
  #allocation0 [shape = 'u32[]', space=smem, size = 0x4, offset = 0x4, fixed_abs, tag = 'smem constant byte address 0x4 - core index']
  #allocation1 [shape = 'u32[144,128]{1,0:T(1,128)}', space=vmem, size = 0x12000, scoped, tag = 'internal scratch']
  #allocation2 [shape = 'bf16[352,16]{1,0:T(16,128)(2,1)}', space=vmem, size = 0x16000, scoped, tag = 'scratch operand']
  %s0 = inlined_call_operand.vmem [shape: bf16[2,352,32], index: 0, kind: input, shape index: {}]
  %s1 = inlined_call_operand.vmem [shape: f32[352,1], index: 1, kind: input, shape index: {}]
  %s2 = inlined_call_operand.vmem [shape: bf16[32,16], index: 2, kind: input, shape index: {}]
  %s3 = inlined_call_operand.vmem [shape: f32[1,16], index: 3, kind: input, shape index: {}]
  %s4 = inlined_call_operand.vmem [shape: bf16[9,16,16], index: 4, kind: input, shape index: {}]
  %s5 = inlined_call_operand.vmem [shape: f32[1,16], index: 5, kind: input, shape index: {}]
  %s6 = inlined_call_operand.vmem [shape: bf16[16,64], index: 6, kind: input, shape index: {}]
  %s7 = inlined_call_operand.vmem [shape: f32[1,64], index: 7, kind: input, shape index: {}]
  %s8 = inlined_call_operand.vmem [shape: bf16[32,64], index: 8, kind: input, shape index: {}]
  %s9 = inlined_call_operand.vmem [shape: bf16[2,72,64], index: 9, kind: output, shape index: {}]
  %s10 = sld [smem:[#allocation0]]
  $region69: #{bottleneck_forward.1} parent=0
    _
  %s12 = ssub.s32 1, %s10
  %s13 = scalar_select 0, %s12, %s10
  loop: start=0, step=1, limit=4
  $region2: #{bottleneck_forward.1} parent=0 // loop_pre_header
    _
  $region3: #{bottleneck_forward.1} parent=0 // loop_header
    %s15 = sphi 0, %s19
    %p16 = scmp.ge.s32.totalorder %s15, 4
    %s25 = sphi 0, %s27
    %s28 = sphi 0, %s25
    %s29 = sphi 0, %s28
    %s45 = sphi 0, %s29
    %s49 = sphi 0, %s49
    %s51 = sphi 0, %s49
    %s52 = sphi 0, %s51
    %s66 = sphi 0, %s52
    %s70 = sphi 0, %s70
    %s72 = sphi 0, %s70
    %s73 = sphi 0, %s72
    %s87 = sphi 0, %s73
    %s91 = sphi 0, %s91
    %s93 = sphi 0, %s91
    %s94 = sphi 0, %s93
    %s108 = sphi 0, %s94
    %s112 = sphi 0, %s112
    %s114 = sphi 0, %s112
    %s115 = sphi 0, %s114
    %s129 = sphi 0, %s115
    %s133 = sphi 0, %s133
    %s135 = sphi 0, %s133
    %s136 = sphi 0, %s135
    %s150 = sphi 0, %s136
    %s154 = sphi 0, %s154
    %s156 = sphi 0, %s154
    %s157 = sphi 0, %s156
    %s171 = sphi 0, %s157
    %s175 = sphi 0, %s175
    %s177 = sphi 0, %s175
    %s178 = sphi 0, %s177
    %s192 = sphi 0, %s178
    %s196 = sphi 0, %s196
    %s198 = sphi 0, %s196
    %s199 = sphi 0, %s198
    %s213 = sphi 0, %s199
    %s219 = sphi 0, %s221
    %s222 = sphi 0, %s219
    %s223 = sphi 0, %s222
    %s239 = sphi 0, %s223
  $region4: #{bottleneck_forward.1} parent=0 // loop_header_branch
    %18 = sbr.rel (%p16) target = $region8
  $region5: #{bottleneck_forward.1} parent=0 // loop_body
    %s20 = ssub.s32 %s15, 1
    %s21 = ssub.s32 %s15, 2
    %s22 = sadd.s32 %s15, 1
    %s23 = ssub.s32 %s15, %s22
    %p24 = scmp.eq.s32.totalorder %s23, 0
    %s26 = sadd.s32 %s25, 1
    %s27 = scalar_select %p24, %s25, %s26
    %p30 = pneg %p24
    %p31 = scmp.eq.s32.totalorder %s15, 1
    %p32 = por %p30, %p31
    %p33 = scmp.ne.s32.totalorder %s25, %s28
    %p34 = scmp.eq.s32.totalorder %s15, 0
    %p35 = por %p33, %p34
    %p36 = scmp.ne.s32.totalorder %s25, %s28
    %p37 = scmp.eq.s32.totalorder %s20, 1
    %p38 = por %p36, %p37
    %p39 = scmp.ne.s32.totalorder %s28, %s29
    %p40 = scmp.eq.s32.totalorder %s20, 0
    %p41 = por %p39, %p40
    %p42 = scmp.ne.s32.totalorder %s28, %s29
    %p43 = scmp.eq.s32.totalorder %s21, 1
    %p44 = por %p42, %p43
    %p46 = scmp.ne.s32.totalorder %s29, %s45
    %p47 = scmp.eq.s32.totalorder %s21, 0
    %p48 = por %p46, %p47
    %s50 = sadd.s32 %s49, 1
    %p53 = scmp.eq.s32.totalorder %s15, 1
    %p54 = scmp.ne.s32.totalorder %s49, %s51
    %p55 = scmp.eq.s32.totalorder %s15, 0
    %p56 = por %p54, %p55
    %p57 = scmp.ne.s32.totalorder %s49, %s51
    %p58 = scmp.eq.s32.totalorder %s20, 1
    %p59 = por %p57, %p58
    %p60 = scmp.ne.s32.totalorder %s51, %s52
    %p61 = scmp.eq.s32.totalorder %s20, 0
    %p62 = por %p60, %p61
    %p63 = scmp.ne.s32.totalorder %s51, %s52
    %p64 = scmp.eq.s32.totalorder %s21, 1
    %p65 = por %p63, %p64
    %p67 = scmp.ne.s32.totalorder %s52, %s66
    %p68 = scmp.eq.s32.totalorder %s21, 0
    %p69 = por %p67, %p68
    %s71 = sadd.s32 %s70, 1
    %p74 = scmp.eq.s32.totalorder %s15, 1
    %p75 = scmp.ne.s32.totalorder %s70, %s72
    %p76 = scmp.eq.s32.totalorder %s15, 0
    %p77 = por %p75, %p76
    %p78 = scmp.ne.s32.totalorder %s70, %s72
    %p79 = scmp.eq.s32.totalorder %s20, 1
    %p80 = por %p78, %p79
    %p81 = scmp.ne.s32.totalorder %s72, %s73
    %p82 = scmp.eq.s32.totalorder %s20, 0
    %p83 = por %p81, %p82
    %p84 = scmp.ne.s32.totalorder %s72, %s73
    %p85 = scmp.eq.s32.totalorder %s21, 1
    %p86 = por %p84, %p85
    %p88 = scmp.ne.s32.totalorder %s73, %s87
    %p89 = scmp.eq.s32.totalorder %s21, 0
    %p90 = por %p88, %p89
    %s92 = sadd.s32 %s91, 1
    %p95 = scmp.eq.s32.totalorder %s15, 1
    %p96 = scmp.ne.s32.totalorder %s91, %s93
    %p97 = scmp.eq.s32.totalorder %s15, 0
    %p98 = por %p96, %p97
    %p99 = scmp.ne.s32.totalorder %s91, %s93
    %p100 = scmp.eq.s32.totalorder %s20, 1
    %p101 = por %p99, %p100
    %p102 = scmp.ne.s32.totalorder %s93, %s94
    %p103 = scmp.eq.s32.totalorder %s20, 0
    %p104 = por %p102, %p103
    %p105 = scmp.ne.s32.totalorder %s93, %s94
    %p106 = scmp.eq.s32.totalorder %s21, 1
    %p107 = por %p105, %p106
    %p109 = scmp.ne.s32.totalorder %s94, %s108
    %p110 = scmp.eq.s32.totalorder %s21, 0
    %p111 = por %p109, %p110
    %s113 = sadd.s32 %s112, 1
    %p116 = scmp.eq.s32.totalorder %s15, 1
    %p117 = scmp.ne.s32.totalorder %s112, %s114
    %p118 = scmp.eq.s32.totalorder %s15, 0
    %p119 = por %p117, %p118
    %p120 = scmp.ne.s32.totalorder %s112, %s114
    %p121 = scmp.eq.s32.totalorder %s20, 1
    %p122 = por %p120, %p121
    %p123 = scmp.ne.s32.totalorder %s114, %s115
    %p124 = scmp.eq.s32.totalorder %s20, 0
    %p125 = por %p123, %p124
    %p126 = scmp.ne.s32.totalorder %s114, %s115
    %p127 = scmp.eq.s32.totalorder %s21, 1
    %p128 = por %p126, %p127
    %p130 = scmp.ne.s32.totalorder %s115, %s129
    %p131 = scmp.eq.s32.totalorder %s21, 0
    %p132 = por %p130, %p131
    %s134 = sadd.s32 %s133, 1
    %p137 = scmp.eq.s32.totalorder %s15, 1
    %p138 = scmp.ne.s32.totalorder %s133, %s135
    %p139 = scmp.eq.s32.totalorder %s15, 0
    %p140 = por %p138, %p139
    %p141 = scmp.ne.s32.totalorder %s133, %s135
    %p142 = scmp.eq.s32.totalorder %s20, 1
    %p143 = por %p141, %p142
    %p144 = scmp.ne.s32.totalorder %s135, %s136
    %p145 = scmp.eq.s32.totalorder %s20, 0
    %p146 = por %p144, %p145
    %p147 = scmp.ne.s32.totalorder %s135, %s136
    %p148 = scmp.eq.s32.totalorder %s21, 1
    %p149 = por %p147, %p148
    %p151 = scmp.ne.s32.totalorder %s136, %s150
    %p152 = scmp.eq.s32.totalorder %s21, 0
    %p153 = por %p151, %p152
    %s155 = sadd.s32 %s154, 1
    %p158 = scmp.eq.s32.totalorder %s15, 1
    %p159 = scmp.ne.s32.totalorder %s154, %s156
    %p160 = scmp.eq.s32.totalorder %s15, 0
    %p161 = por %p159, %p160
    %p162 = scmp.ne.s32.totalorder %s154, %s156
    %p163 = scmp.eq.s32.totalorder %s20, 1
    %p164 = por %p162, %p163
    %p165 = scmp.ne.s32.totalorder %s156, %s157
    %p166 = scmp.eq.s32.totalorder %s20, 0
    %p167 = por %p165, %p166
    %p168 = scmp.ne.s32.totalorder %s156, %s157
    %p169 = scmp.eq.s32.totalorder %s21, 1
    %p170 = por %p168, %p169
    %p172 = scmp.ne.s32.totalorder %s157, %s171
    %p173 = scmp.eq.s32.totalorder %s21, 0
    %p174 = por %p172, %p173
    %s176 = sadd.s32 %s175, 1
    %p179 = scmp.eq.s32.totalorder %s15, 1
    %p180 = scmp.ne.s32.totalorder %s175, %s177
    %p181 = scmp.eq.s32.totalorder %s15, 0
    %p182 = por %p180, %p181
    %p183 = scmp.ne.s32.totalorder %s175, %s177
    %p184 = scmp.eq.s32.totalorder %s20, 1
    %p185 = por %p183, %p184
    %p186 = scmp.ne.s32.totalorder %s177, %s178
    %p187 = scmp.eq.s32.totalorder %s20, 0
    %p188 = por %p186, %p187
    %p189 = scmp.ne.s32.totalorder %s177, %s178
    %p190 = scmp.eq.s32.totalorder %s21, 1
    %p191 = por %p189, %p190
    %p193 = scmp.ne.s32.totalorder %s178, %s192
    %p194 = scmp.eq.s32.totalorder %s21, 0
    %p195 = por %p193, %p194
    %s197 = sadd.s32 %s196, 1
    %p200 = scmp.eq.s32.totalorder %s15, 1
    %p201 = scmp.ne.s32.totalorder %s196, %s198
    %p202 = scmp.eq.s32.totalorder %s15, 0
    %p203 = por %p201, %p202
    %p204 = scmp.ne.s32.totalorder %s196, %s198
    %p205 = scmp.eq.s32.totalorder %s20, 1
    %p206 = por %p204, %p205
    %p207 = scmp.ne.s32.totalorder %s198, %s199
    %p208 = scmp.eq.s32.totalorder %s20, 0
    %p209 = por %p207, %p208
    %p210 = scmp.ne.s32.totalorder %s198, %s199
    %p211 = scmp.eq.s32.totalorder %s21, 1
    %p212 = por %p210, %p211
    %p214 = scmp.ne.s32.totalorder %s199, %s213
    %p215 = scmp.eq.s32.totalorder %s21, 0
    %p216 = por %p214, %p215
    %s217 = ssub.s32 %s15, %s22
    %p218 = scmp.eq.s32.totalorder %s217, 0
    %s220 = sadd.s32 %s219, 1
    %s221 = scalar_select %p218, %s219, %s220
    %p224 = pneg %p218
    %p225 = scmp.eq.s32.totalorder %s15, 1
    %p226 = por %p224, %p225
    %p227 = scmp.ne.s32.totalorder %s219, %s222
    %p228 = scmp.eq.s32.totalorder %s15, 0
    %p229 = por %p227, %p228
    %p230 = scmp.ne.s32.totalorder %s219, %s222
    %p231 = scmp.eq.s32.totalorder %s20, 1
    %p232 = por %p230, %p231
    %p233 = scmp.ne.s32.totalorder %s222, %s223
    %p234 = scmp.eq.s32.totalorder %s20, 0
    %p235 = por %p233, %p234
    %p236 = scmp.ne.s32.totalorder %s222, %s223
    %p237 = scmp.eq.s32.totalorder %s21, 1
    %p238 = por %p236, %p237
    %p240 = scmp.ne.s32.totalorder %s223, %s239
    %p241 = scmp.eq.s32.totalorder %s21, 0
    %p242 = por %p240, %p241
    %p243 = scmp.le.s32.totalorder 1, %s15
    %p244 = scmp.lt.s32.totalorder %s15, 3
    %p245 = pnand %p243, %p244
    %p246 = pneg %p245
    // Predicated region
    $region9: #{bottleneck_forward.1} parent=5 // pred_check
      _
    $region10: #{bottleneck_forward.1} parent=5 // pred_check_branch
      %248 = sbr.rel (%p245) target = $region12
    $region11: #{bottleneck_forward.1} parent=5 // pred_region
      %s249 = ssub.s32 %s15, 1
      // Predicated region
      $region13: #{bottleneck_forward.1} parent=11 // pred_check
        %p250 = pneg %p62
      $region14: #{bottleneck_forward.1} parent=11 // pred_check_branch
        %252 = sbr.rel (%p250) target = $region16
      $region15: #{bottleneck_forward.1} parent=11 // pred_region
        _
      $region16: #{bottleneck_forward.1} parent=11 // pred_fallthru
        _
      // Predicated region
      $region17: #{bottleneck_forward.1} parent=11 // pred_check
        %p253 = pneg %p83
      $region18: #{bottleneck_forward.1} parent=11 // pred_check_branch
        %255 = sbr.rel (%p253) target = $region20
      $region19: #{bottleneck_forward.1} parent=11 // pred_region
        _
      $region20: #{bottleneck_forward.1} parent=11 // pred_fallthru
        _
      // Predicated region
      $region21: #{bottleneck_forward.1} parent=11 // pred_check
        %p256 = pneg %p104
      $region22: #{bottleneck_forward.1} parent=11 // pred_check_branch
        %258 = sbr.rel (%p256) target = $region24
      $region23: #{bottleneck_forward.1} parent=11 // pred_region
        _
      $region24: #{bottleneck_forward.1} parent=11 // pred_fallthru
        _
      // Predicated region
      $region25: #{bottleneck_forward.1} parent=11 // pred_check
        %p259 = pneg %p125
      $region26: #{bottleneck_forward.1} parent=11 // pred_check_branch
        %261 = sbr.rel (%p259) target = $region28
      $region27: #{bottleneck_forward.1} parent=11 // pred_region
        _
      $region28: #{bottleneck_forward.1} parent=11 // pred_fallthru
        _
      // Predicated region
      $region29: #{bottleneck_forward.1} parent=11 // pred_check
        %p262 = pneg %p146
      $region30: #{bottleneck_forward.1} parent=11 // pred_check_branch
        %264 = sbr.rel (%p262) target = $region32
      $region31: #{bottleneck_forward.1} parent=11 // pred_region
        _
      $region32: #{bottleneck_forward.1} parent=11 // pred_fallthru
        _
      // Predicated region
      $region33: #{bottleneck_forward.1} parent=11 // pred_check
        %p265 = pneg %p167
      $region34: #{bottleneck_forward.1} parent=11 // pred_check_branch
        %267 = sbr.rel (%p265) target = $region36
      $region35: #{bottleneck_forward.1} parent=11 // pred_region
        _
      $region36: #{bottleneck_forward.1} parent=11 // pred_fallthru
        _
      // Predicated region
      $region37: #{bottleneck_forward.1} parent=11 // pred_check
        %p268 = pneg %p188
      $region38: #{bottleneck_forward.1} parent=11 // pred_check_branch
        %270 = sbr.rel (%p268) target = $region40
      $region39: #{bottleneck_forward.1} parent=11 // pred_region
        _
      $region40: #{bottleneck_forward.1} parent=11 // pred_fallthru
        _
      // Predicated region
      $region41: #{bottleneck_forward.1} parent=11 // pred_check
        %p271 = pneg %p209
      $region42: #{bottleneck_forward.1} parent=11 // pred_check_branch
        %273 = sbr.rel (%p271) target = $region44
      $region43: #{bottleneck_forward.1} parent=11 // pred_region
        _
      $region44: #{bottleneck_forward.1} parent=11 // pred_fallthru
        _
    $region12: #{bottleneck_forward.1} parent=5 // pred_fallthru
      _
    %p274 = scmp.lt.s32.totalorder %s15, 2
    // Predicated region
    $region45: #{bottleneck_forward.1} parent=5 // pred_check
      %p275 = pneg %p274
    $region46: #{bottleneck_forward.1} parent=5 // pred_check_branch
      %277 = sbr.rel (%p275) target = $region48
    $region47: #{bottleneck_forward.1} parent=5 // pred_region
      // Predicated region
      $region49: #{bottleneck_forward.1} parent=47 // pred_check
        %p278 = pneg %p35
      $region50: #{bottleneck_forward.1} parent=47 // pred_check_branch
        %280 = sbr.rel (%p278) target = $region52
      $region51: #{bottleneck_forward.1} parent=47 // pred_region
        %p281 = scmp.lt.s32.totalorder %s15, 1
        %s282 = scalar_select %p281, %s15, 1
        %s283 = smul.addr %s282, 44
        %s284 = smul.addr %s283, 4
        %s285 = scalar_lea.vmem %s0, %s284
      $region52: #{bottleneck_forward.1} parent=47 // pred_fallthru
        _
    $region48: #{bottleneck_forward.1} parent=5 // pred_fallthru
      _
    %p286 = scmp.le.s32.totalorder 1, %s15
    %p287 = scmp.lt.s32.totalorder %s15, 3
    %p288 = pnand %p286, %p287
    %p289 = pneg %p288
    // Predicated region
    $region53: #{bottleneck_forward.1} parent=5 // pred_check
      _
    $region54: #{bottleneck_forward.1} parent=5 // pred_check_branch
      %291 = sbr.rel (%p288) target = $region56
    $region55: #{bottleneck_forward.1} parent=5 // pred_region
      %s292 = ssub.s32 %s15, 1
      %p293 = scmp.lt.s32.totalorder %s20, 1
      %s294 = scalar_select %p293, %s20, 1
      %s295 = smul.addr %s294, 44
      %s296 = smul.addr %s295, 4
      %s297 = scalar_lea.vmem %s0, %s296
      %p298 = pneg %p41
      %p299 = pneg %p38
      %p300 = pneg %p62
      %p301 = pneg %p59
      %p302 = pneg %p83
      %p303 = pneg %p80
      %p304 = pneg %p104
      %p305 = pneg %p101
      %p306 = pneg %p125
      %p307 = pneg %p122
      %p308 = pneg %p146
      %p309 = pneg %p143
      %p310 = pneg %p167
      %p311 = pneg %p164
      %p312 = pneg %p188
      %p313 = pneg %p185
      %p314 = pneg %p209
      %p315 = pneg %p206
      %p316 = pneg %p235
      %p317 = pneg %p232
      %p318 = scmp.lt.s32.totalorder %s20, 1
      %s319 = scalar_select %p318, %s20, 1
      %s320 = smul.addr %s319, 9
      %s321 = smul.addr %s320, 4
      %s322 = scalar_lea.vmem %s9, %s321
      %p323 = scmp.lt.s32.totalorder %s20, 1
      %s324 = scalar_select %p323, %s20, 1
      %s325 = smul.addr %s324, 44
      %s326 = smul.addr %s325, 4
      %s327 = scalar_lea.vmem %s0, %s326
      %p328 = scmp.lt.s32.totalorder %s20, 1
      %s329 = scalar_select %p328, %s20, 1
      %s330 = smul.addr %s329, 9
      %s331 = smul.addr %s330, 4
      %s332 = scalar_lea.vmem %s9, %s331
      %v334 = vld [vmem:[%s327] sm:$0xf]
      %v335 = vld [vmem:[%s327 + $0x4] sm:$0xf]
      %v336 = vld [vmem:[%s327 + $0x8] sm:$0xf]
      %v337 = vld [vmem:[%s327 + $0xc] sm:$0xf]
      %v338 = vld [vmem:[%s327 + $0x10] sm:$0xf]
      %v339 = vld [vmem:[%s327 + $0x14] sm:$0xf]
      %v340 = vld [vmem:[%s327 + $0x18] sm:$0xf]
      %v341 = vld [vmem:[%s327 + $0x1c] sm:$0xf]
      %v342 = vld [vmem:[%s327 + $0x20] sm:$0xf]
      %v343 = vld [vmem:[%s327 + $0x24] sm:$0xf]
      %v344 = vld [vmem:[%s327 + $0x28] sm:$0xf]
      %v345 = vld [vmem:[%s327 + $0x2c] sm:$0xf]
      %v346 = vld [vmem:[%s327 + $0x30] sm:$0xf]
      %v347 = vld [vmem:[%s327 + $0x34] sm:$0xf]
      %v348 = vld [vmem:[%s327 + $0x38] sm:$0xf]
      %v349 = vld [vmem:[%s327 + $0x3c] sm:$0xf]
      %v350 = vld [vmem:[%s327 + $0x40] sm:$0xf]
      %v351 = vld [vmem:[%s327 + $0x44] sm:$0xf]
      %v352 = vld [vmem:[%s327 + $0x48] sm:$0xf]
      %v353 = vld [vmem:[%s327 + $0x4c] sm:$0xf]
      %v354 = vld [vmem:[%s327 + $0x50] sm:$0xf]
      %v355 = vld [vmem:[%s327 + $0x54] sm:$0xf]
      %v356 = vld [vmem:[%s327 + $0x58] sm:$0xf]
      %v357 = vld [vmem:[%s327 + $0x5c] sm:$0xf]
      %v358 = vld [vmem:[%s327 + $0x60] sm:$0xf]
      %v359 = vld [vmem:[%s327 + $0x64] sm:$0xf]
      %v360 = vld [vmem:[%s327 + $0x68] sm:$0xf]
      %v361 = vld [vmem:[%s327 + $0x6c] sm:$0xf]
      %v362 = vld [vmem:[%s327 + $0x70] sm:$0xf]
      %v363 = vld [vmem:[%s327 + $0x74] sm:$0xf]
      %v364 = vld [vmem:[%s327 + $0x78] sm:$0xf]
      %v365 = vld [vmem:[%s327 + $0x7c] sm:$0xf]
      %v366 = vld [vmem:[%s327 + $0x80] sm:$0xf]
      %v367 = vld [vmem:[%s327 + $0x84] sm:$0xf]
      %v368 = vld [vmem:[%s327 + $0x88] sm:$0xf]
      %v369 = vld [vmem:[%s327 + $0x8c] sm:$0xf]
      %v370 = vld [vmem:[%s327 + $0x90] sm:$0xf]
      %v371 = vld [vmem:[%s327 + $0x94] sm:$0xf]
      %v372 = vld [vmem:[%s327 + $0x98] sm:$0xf]
      %v373 = vld [vmem:[%s327 + $0x9c] sm:$0xf]
      %v374 = vld [vmem:[%s327 + $0xa0] sm:$0xf]
      %v375 = vld [vmem:[%s327 + $0xa4] sm:$0xf]
      %v376 = vld [vmem:[%s327 + $0xa8] sm:$0xf]
      %v377 = vld [vmem:[%s327 + $0xac] sm:$0xf]
      %v378 = vld [vmem:[%s2] sm:$0xf]
      %v379 = vld [vmem:[%s2 + $0x4] sm:$0xf]
      %v380 = vld [vmem:[%s2 + $0x8] sm:$0xf]
      %v381 = vld [vmem:[%s2 + $0xc] sm:$0xf]
      %v382 = vld [vmem:[%s3] sm:$0x1]
      %v384 = vlaneseq
      %v385 = vshrl.u32 %v384, 7
      %v386 = vsub.s32 0, %v385
      %v387 = vrot.slane %v382, %v386
      %v433 = vunpack.c.l.b16 %v334
      %v434 = vunpack.c.l.b16 %v335
      %v435 = vunpack.c.l.b16 %v336
      %v436 = vunpack.c.l.b16 %v337
      %v437 = vunpack.c.l.b16 %v338
      %v438 = vunpack.c.l.b16 %v339
      %v439 = vunpack.c.l.b16 %v340
      %v440 = vunpack.c.l.b16 %v341
      %v441 = vunpack.c.l.b16 %v342
      %v442 = vunpack.c.l.b16 %v343
      %v443 = vunpack.c.l.b16 %v344
      %v444 = vunpack.c.l.b16 %v345
      %v445 = vunpack.c.l.b16 %v346
      %v446 = vunpack.c.l.b16 %v347
      %v447 = vunpack.c.l.b16 %v348
      %v448 = vunpack.c.l.b16 %v349
      %v449 = vunpack.c.l.b16 %v350
      %v450 = vunpack.c.l.b16 %v351
      %v451 = vunpack.c.l.b16 %v352
      %v452 = vunpack.c.l.b16 %v353
      %v453 = vunpack.c.l.b16 %v354
      %v454 = vunpack.c.l.b16 %v355
      %v455 = vunpack.c.l.b16 %v356
      %v456 = vunpack.c.l.b16 %v357
      %v457 = vunpack.c.l.b16 %v358
      %v458 = vunpack.c.l.b16 %v359
      %v459 = vunpack.c.l.b16 %v360
      %v460 = vunpack.c.l.b16 %v361
      %v461 = vunpack.c.l.b16 %v362
      %v462 = vunpack.c.l.b16 %v363
      %v463 = vunpack.c.l.b16 %v364
      %v464 = vunpack.c.l.b16 %v365
      %v465 = vunpack.c.l.b16 %v366
      %v466 = vunpack.c.l.b16 %v367
      %v467 = vunpack.c.l.b16 %v368
      %v468 = vunpack.c.l.b16 %v369
      %v469 = vunpack.c.l.b16 %v370
      %v470 = vunpack.c.l.b16 %v371
      %v471 = vunpack.c.l.b16 %v372
      %v472 = vunpack.c.l.b16 %v373
      %v473 = vunpack.c.l.b16 %v374
      %v474 = vunpack.c.l.b16 %v375
      %v475 = vunpack.c.l.b16 %v376
      %v476 = vunpack.c.l.b16 %v377
      %v477 = vpack.c.b16 %v434, %v433
      %v478 = vpack.c.b16 %v436, %v435
      %v479 = vpack.c.b16 %v438, %v437
      %v480 = vpack.c.b16 %v440, %v439
      %v481 = vpack.c.b16 %v442, %v441
      %v482 = vpack.c.b16 %v444, %v443
      %v483 = vpack.c.b16 %v446, %v445
      %v484 = vpack.c.b16 %v448, %v447
      %v485 = vpack.c.b16 %v450, %v449
      %v486 = vpack.c.b16 %v452, %v451
      %v487 = vpack.c.b16 %v454, %v453
      %v488 = vpack.c.b16 %v456, %v455
      %v489 = vpack.c.b16 %v458, %v457
      %v490 = vpack.c.b16 %v460, %v459
      %v491 = vpack.c.b16 %v462, %v461
      %v492 = vpack.c.b16 %v464, %v463
      %v493 = vpack.c.b16 %v466, %v465
      %v494 = vpack.c.b16 %v468, %v467
      %v495 = vpack.c.b16 %v470, %v469
      %v496 = vpack.c.b16 %v472, %v471
      %v497 = vpack.c.b16 %v474, %v473
      %v498 = vpack.c.b16 %v476, %v475
      %v503 = vunpack.c.l.b16 %v378
      %v504 = vunpack.c.l.b16 %v379
      %v505 = vunpack.c.l.b16 %v380
      %v506 = vunpack.c.l.b16 %v381
      %v507 = vpack.c.b16 %v504, %v503
      %v508 = vpack.c.b16 %v506, %v505
      %vm511 = vcmask 261120
      %v513 = vsel %vm511, %v477, 0
      %v516 = vsel %vm511, %v478, 0
      %v519 = vsel %vm511, %v479, 0
      %v522 = vsel %vm511, %v480, 0
      %v525 = vsel %vm511, %v481, 0
      %v528 = vsel %vm511, %v482, 0
      %v531 = vsel %vm511, %v483, 0
      %v534 = vsel %vm511, %v484, 0
      %v537 = vsel %vm511, %v485, 0
      %v540 = vsel %vm511, %v486, 0
      %v543 = vsel %vm511, %v487, 0
      %v546 = vsel %vm511, %v488, 0
      %v549 = vsel %vm511, %v489, 0
      %v552 = vsel %vm511, %v490, 0
      %v555 = vsel %vm511, %v491, 0
      %v558 = vsel %vm511, %v492, 0
      %v561 = vsel %vm511, %v493, 0
      %v564 = vsel %vm511, %v494, 0
      %v567 = vsel %vm511, %v495, 0
      %v570 = vsel %vm511, %v496, 0
      %v573 = vsel %vm511, %v497, 0
      %v576 = vsel %vm511, %v498, 0
      %578 = vmatprep.subr.bf16.mxu0 0
      %579 = vmatpush1.bf16.msra.mxu0 %v507
      %580 = vmatprep.subr.bf16.mxu0 0
      %581 = vmatpush1.bf16.msra.mxu0 %v508
      %582 = vmatprep.subr.bf16.mxu0 0
      %583 = vmatpush1.bf16.msra.mxu0 0
      %584 = vmatprep.subr.bf16.mxu0 0
      %585 = vmatpush1.bf16.msra.mxu0 0
      %586 = vmatprep.subr.bf16.mxu0 0
      %587 = vmatpush1.bf16.msra.mxu0 0
      %588 = vmatprep.subr.bf16.mxu0 0
      %589 = vmatpush1.bf16.msra.mxu0 0
      %590 = vmatprep.subr.bf16.mxu0 0
      %591 = vmatpush1.bf16.msra.mxu0 0
      %592 = vmatprep.subr.bf16.mxu0 0
      %593 = vmatpush1.bf16.msra.mxu0 0
      %594 = vmatprep.subr.bf16.mxu0 0
      %595 = vmatpush1.bf16.msra.mxu0 0
      %596 = vmatprep.subr.bf16.mxu0 0
      %597 = vmatpush1.bf16.msra.mxu0 0
      %598 = vmatprep.subr.bf16.mxu0 0
      %599 = vmatpush1.bf16.msra.mxu0 0
      %600 = vmatprep.subr.bf16.mxu0 0
      %601 = vmatpush1.bf16.msra.mxu0 0
      %602 = vmatprep.subr.bf16.mxu0 0
      %603 = vmatpush1.bf16.msra.mxu0 0
      %604 = vmatprep.subr.bf16.mxu0 0
      %605 = vmatpush1.bf16.msra.mxu0 0
      %606 = vmatprep.subr.bf16.mxu0 0
      %607 = vmatpush1.bf16.msra.mxu0 0
      %608 = vmatprep.subr.bf16.mxu0 0
      %609 = vmatpush1.bf16.msra.mxu0 0
      %610 = vmatprep.mubr.bf16.mxu0 0
      %611 = vmatmul.mubr.bf16.gmra.mrb[0].mxu0 %v513
      %v612 = vpop.f32.mrb[0].mxu0
      %v613 = vadd.f32 %v387, %v612
      %v614 = vpop.f32.mrb[0].mxu0
      %v615 = vpop.f32.mrb[0].mxu0
      %v616 = vadd.f32 %v387, %v615
      %v617 = vpop.f32.mrb[0].mxu0
      %618 = vmatprep.mubr.bf16.mxu0 0
      %619 = vmatmul.mubr.bf16.gmra.mrb[0].mxu0 %v516
      %v620 = vpop.f32.mrb[0].mxu0
      %v621 = vadd.f32 %v387, %v620
      %v622 = vpop.f32.mrb[0].mxu0
      %v623 = vpop.f32.mrb[0].mxu0
      %v624 = vadd.f32 %v387, %v623
      %v625 = vpop.f32.mrb[0].mxu0
      %626 = vmatprep.mubr.bf16.mxu0 0
      %627 = vmatmul.mubr.bf16.gmra.mrb[0].mxu0 %v519
      %v628 = vpop.f32.mrb[0].mxu0
      %v629 = vadd.f32 %v387, %v628
      %v630 = vpop.f32.mrb[0].mxu0
      %v631 = vpop.f32.mrb[0].mxu0
      %v632 = vadd.f32 %v387, %v631
      %v633 = vpop.f32.mrb[0].mxu0
      %634 = vmatprep.mubr.bf16.mxu0 0
      %635 = vmatmul.mubr.bf16.gmra.mrb[0].mxu0 %v522
      %v636 = vpop.f32.mrb[0].mxu0
      %v637 = vadd.f32 %v387, %v636
      %v638 = vpop.f32.mrb[0].mxu0
      %v639 = vpop.f32.mrb[0].mxu0
      %v640 = vadd.f32 %v387, %v639
      %v641 = vpop.f32.mrb[0].mxu0
      %642 = vmatprep.mubr.bf16.mxu0 0
      %643 = vmatmul.mubr.bf16.gmra.mrb[0].mxu0 %v525
      %v644 = vpop.f32.mrb[0].mxu0
      %v645 = vadd.f32 %v387, %v644
      %v646 = vpop.f32.mrb[0].mxu0
      %v647 = vpop.f32.mrb[0].mxu0
      %v648 = vadd.f32 %v387, %v647
      %v649 = vpop.f32.mrb[0].mxu0
      %650 = vmatprep.mubr.bf16.mxu0 0
      %651 = vmatmul.mubr.bf16.gmra.mrb[0].mxu0 %v528
      %v652 = vpop.f32.mrb[0].mxu0
      %v653 = vadd.f32 %v387, %v652
      %v654 = vpop.f32.mrb[0].mxu0
      %v655 = vpop.f32.mrb[0].mxu0
      %v656 = vadd.f32 %v387, %v655
      %v657 = vpop.f32.mrb[0].mxu0
      %658 = vmatprep.mubr.bf16.mxu0 0
      %659 = vmatmul.mubr.bf16.gmra.mrb[0].mxu0 %v531
      %v660 = vpop.f32.mrb[0].mxu0
      %v661 = vadd.f32 %v387, %v660
      %v662 = vpop.f32.mrb[0].mxu0
      %v663 = vpop.f32.mrb[0].mxu0
      %v664 = vadd.f32 %v387, %v663
      %v665 = vpop.f32.mrb[0].mxu0
      %666 = vmatprep.mubr.bf16.mxu0 0
      %667 = vmatmul.mubr.bf16.gmra.mrb[0].mxu0 %v534
      %v668 = vpop.f32.mrb[0].mxu0
      %v669 = vadd.f32 %v387, %v668
      %v670 = vpop.f32.mrb[0].mxu0
      %v671 = vpop.f32.mrb[0].mxu0
      %v672 = vadd.f32 %v387, %v671
      %v673 = vpop.f32.mrb[0].mxu0
      %674 = vmatprep.mubr.bf16.mxu0 0
      %675 = vmatmul.mubr.bf16.gmra.mrb[0].mxu0 %v537
      %v676 = vpop.f32.mrb[0].mxu0
      %v677 = vadd.f32 %v387, %v676
      %v678 = vpop.f32.mrb[0].mxu0
      %v679 = vpop.f32.mrb[0].mxu0
      %v680 = vadd.f32 %v387, %v679
      %v681 = vpop.f32.mrb[0].mxu0
      %682 = vmatprep.mubr.bf16.mxu0 0
      %683 = vmatmul.mubr.bf16.gmra.mrb[0].mxu0 %v540
      %v684 = vpop.f32.mrb[0].mxu0
      %v685 = vadd.f32 %v387, %v684
      %v686 = vpop.f32.mrb[0].mxu0
      %v687 = vpop.f32.mrb[0].mxu0
      %v688 = vadd.f32 %v387, %v687
      %v689 = vpop.f32.mrb[0].mxu0
      %690 = vmatprep.mubr.bf16.mxu0 0
      %691 = vmatmul.mubr.bf16.gmra.mrb[0].mxu0 %v543
      %v692 = vpop.f32.mrb[0].mxu0
      %v693 = vadd.f32 %v387, %v692
      %v694 = vpop.f32.mrb[0].mxu0
      %v695 = vpop.f32.mrb[0].mxu0
      %v696 = vadd.f32 %v387, %v695
      %v697 = vpop.f32.mrb[0].mxu0
      %698 = vmatprep.mubr.bf16.mxu0 0
      %699 = vmatmul.mubr.bf16.gmra.mrb[0].mxu0 %v546
      %v700 = vpop.f32.mrb[0].mxu0
      %v701 = vadd.f32 %v387, %v700
      %v702 = vpop.f32.mrb[0].mxu0
      %v703 = vpop.f32.mrb[0].mxu0
      %v704 = vadd.f32 %v387, %v703
      %v705 = vpop.f32.mrb[0].mxu0
      %706 = vmatprep.mubr.bf16.mxu0 0
      %707 = vmatmul.mubr.bf16.gmra.mrb[0].mxu0 %v549
      %v708 = vpop.f32.mrb[0].mxu0
      %v709 = vadd.f32 %v387, %v708
      %v710 = vpop.f32.mrb[0].mxu0
      %v711 = vpop.f32.mrb[0].mxu0
      %v712 = vadd.f32 %v387, %v711
      %v713 = vpop.f32.mrb[0].mxu0
      %714 = vmatprep.mubr.bf16.mxu0 0
      %715 = vmatmul.mubr.bf16.gmra.mrb[0].mxu0 %v552
      %v716 = vpop.f32.mrb[0].mxu0
      %v717 = vadd.f32 %v387, %v716
      %v718 = vpop.f32.mrb[0].mxu0
      %v719 = vpop.f32.mrb[0].mxu0
      %v720 = vadd.f32 %v387, %v719
      %v721 = vpop.f32.mrb[0].mxu0
      %722 = vmatprep.mubr.bf16.mxu0 0
      %723 = vmatmul.mubr.bf16.gmra.mrb[0].mxu0 %v555
      %v724 = vpop.f32.mrb[0].mxu0
      %v725 = vadd.f32 %v387, %v724
      %v726 = vpop.f32.mrb[0].mxu0
      %v727 = vpop.f32.mrb[0].mxu0
      %v728 = vadd.f32 %v387, %v727
      %v729 = vpop.f32.mrb[0].mxu0
      %730 = vmatprep.mubr.bf16.mxu0 0
      %731 = vmatmul.mubr.bf16.gmra.mrb[0].mxu0 %v558
      %v732 = vpop.f32.mrb[0].mxu0
      %v733 = vadd.f32 %v387, %v732
      %v734 = vpop.f32.mrb[0].mxu0
      %v735 = vpop.f32.mrb[0].mxu0
      %v736 = vadd.f32 %v387, %v735
      %v737 = vpop.f32.mrb[0].mxu0
      %738 = vmatprep.mubr.bf16.mxu0 0
      %739 = vmatmul.mubr.bf16.gmra.mrb[0].mxu0 %v561
      %v740 = vpop.f32.mrb[0].mxu0
      %v741 = vadd.f32 %v387, %v740
      %v742 = vpop.f32.mrb[0].mxu0
      %v743 = vpop.f32.mrb[0].mxu0
      %v744 = vadd.f32 %v387, %v743
      %v745 = vpop.f32.mrb[0].mxu0
      %746 = vmatprep.mubr.bf16.mxu0 0
      %747 = vmatmul.mubr.bf16.gmra.mrb[0].mxu0 %v564
      %v748 = vpop.f32.mrb[0].mxu0
      %v749 = vadd.f32 %v387, %v748
      %v750 = vpop.f32.mrb[0].mxu0
      %v751 = vpop.f32.mrb[0].mxu0
      %v752 = vadd.f32 %v387, %v751
      %v753 = vpop.f32.mrb[0].mxu0
      %754 = vmatprep.mubr.bf16.mxu0 0
      %755 = vmatmul.mubr.bf16.gmra.mrb[0].mxu0 %v567
      %v756 = vpop.f32.mrb[0].mxu0
      %v757 = vadd.f32 %v387, %v756
      %v758 = vpop.f32.mrb[0].mxu0
      %v759 = vpop.f32.mrb[0].mxu0
      %v760 = vadd.f32 %v387, %v759
      %v761 = vpop.f32.mrb[0].mxu0
      %762 = vmatprep.mubr.bf16.mxu0 0
      %763 = vmatmul.mubr.bf16.gmra.mrb[0].mxu0 %v570
      %v764 = vpop.f32.mrb[0].mxu0
      %v765 = vadd.f32 %v387, %v764
      %v766 = vpop.f32.mrb[0].mxu0
      %v767 = vpop.f32.mrb[0].mxu0
      %v768 = vadd.f32 %v387, %v767
      %v769 = vpop.f32.mrb[0].mxu0
      %770 = vmatprep.mubr.bf16.mxu0 0
      %771 = vmatmul.mubr.bf16.gmra.mrb[0].mxu0 %v573
      %v772 = vpop.f32.mrb[0].mxu0
      %v773 = vadd.f32 %v387, %v772
      %v774 = vpop.f32.mrb[0].mxu0
      %v775 = vpop.f32.mrb[0].mxu0
      %v776 = vadd.f32 %v387, %v775
      %v777 = vpop.f32.mrb[0].mxu0
      %778 = vmatprep.mubr.bf16.mxu0 0
      %779 = vmatmul.mubr.bf16.gmra.mrb[0].mxu0 %v576
      %v780 = vpop.f32.mrb[0].mxu0
      %v781 = vadd.f32 %v387, %v780
      %v782 = vpop.f32.mrb[0].mxu0
      %v783 = vpop.f32.mrb[0].mxu0
      %v784 = vadd.f32 %v387, %v783
      %v785 = vpop.f32.mrb[0].mxu0
      %786 = vdwg.mxu0
      %v787 = vmax.f32 %v613, 0.0
      %v788 = vmax.f32 %v616, 0.0
      %v789 = vmax.f32 %v621, 0.0
      %v790 = vmax.f32 %v624, 0.0
      %v791 = vmax.f32 %v629, 0.0
      %v792 = vmax.f32 %v632, 0.0
      %v793 = vmax.f32 %v637, 0.0
      %v794 = vmax.f32 %v640, 0.0
      %v795 = vmax.f32 %v645, 0.0
      %v796 = vmax.f32 %v648, 0.0
      %v797 = vmax.f32 %v653, 0.0
      %v798 = vmax.f32 %v656, 0.0
      %v799 = vmax.f32 %v661, 0.0
      %v800 = vmax.f32 %v664, 0.0
      %v801 = vmax.f32 %v669, 0.0
      %v802 = vmax.f32 %v672, 0.0
      %v803 = vmax.f32 %v677, 0.0
      %v804 = vmax.f32 %v680, 0.0
      %v805 = vmax.f32 %v685, 0.0
      %v806 = vmax.f32 %v688, 0.0
      %v807 = vmax.f32 %v693, 0.0
      %v808 = vmax.f32 %v696, 0.0
      %v809 = vmax.f32 %v701, 0.0
      %v810 = vmax.f32 %v704, 0.0
      %v811 = vmax.f32 %v709, 0.0
      %v812 = vmax.f32 %v712, 0.0
      %v813 = vmax.f32 %v717, 0.0
      %v814 = vmax.f32 %v720, 0.0
      %v815 = vmax.f32 %v725, 0.0
      %v816 = vmax.f32 %v728, 0.0
      %v817 = vmax.f32 %v733, 0.0
      %v818 = vmax.f32 %v736, 0.0
      %v819 = vmax.f32 %v741, 0.0
      %v820 = vmax.f32 %v744, 0.0
      %v821 = vmax.f32 %v749, 0.0
      %v822 = vmax.f32 %v752, 0.0
      %v823 = vmax.f32 %v757, 0.0
      %v824 = vmax.f32 %v760, 0.0
      %v825 = vmax.f32 %v765, 0.0
      %v826 = vmax.f32 %v768, 0.0
      %v827 = vmax.f32 %v773, 0.0
      %v828 = vmax.f32 %v776, 0.0
      %v829 = vmax.f32 %v781, 0.0
      %v830 = vmax.f32 %v784, 0.0
      %v831 = vld [vmem:[%s1] sm:$0xff]
      %v832 = vld [vmem:[%s1 + $0x8] sm:$0xff]
      %v833 = vld [vmem:[%s1 + $0x10] sm:$0xff]
      %v834 = vld [vmem:[%s1 + $0x18] sm:$0xff]
      %v835 = vld [vmem:[%s1 + $0x20] sm:$0xff]
      %v836 = vld [vmem:[%s1 + $0x28] sm:$0xff]
      %v837 = vld [vmem:[%s1 + $0x30] sm:$0xff]
      %v838 = vld [vmem:[%s1 + $0x38] sm:$0xff]
      %v839 = vld [vmem:[%s1 + $0x40] sm:$0xff]
      %v840 = vld [vmem:[%s1 + $0x48] sm:$0xff]
      %v841 = vld [vmem:[%s1 + $0x50] sm:$0xff]
      %v842 = vld [vmem:[%s1 + $0x58] sm:$0xff]
      %v843 = vld [vmem:[%s1 + $0x60] sm:$0xff]
      %v844 = vld [vmem:[%s1 + $0x68] sm:$0xff]
      %v845 = vld [vmem:[%s1 + $0x70] sm:$0xff]
      %v846 = vld [vmem:[%s1 + $0x78] sm:$0xff]
      %v847 = vld [vmem:[%s1 + $0x80] sm:$0xff]
      %v848 = vld [vmem:[%s1 + $0x88] sm:$0xff]
      %v849 = vld [vmem:[%s1 + $0x90] sm:$0xff]
      %v850 = vld [vmem:[%s1 + $0x98] sm:$0xff]
      %v851 = vld [vmem:[%s1 + $0xa0] sm:$0xff]
      %v852 = vld [vmem:[%s1 + $0xa8] sm:$0xff]
      %v853 = vld [vmem:[%s1 + $0xb0] sm:$0xff]
      %v854 = vld [vmem:[%s1 + $0xb8] sm:$0xff]
      %v855 = vld [vmem:[%s1 + $0xc0] sm:$0xff]
      %v856 = vld [vmem:[%s1 + $0xc8] sm:$0xff]
      %v857 = vld [vmem:[%s1 + $0xd0] sm:$0xff]
      %v858 = vld [vmem:[%s1 + $0xd8] sm:$0xff]
      %v859 = vld [vmem:[%s1 + $0xe0] sm:$0xff]
      %v860 = vld [vmem:[%s1 + $0xe8] sm:$0xff]
      %v861 = vld [vmem:[%s1 + $0xf0] sm:$0xff]
      %v862 = vld [vmem:[%s1 + $0xf8] sm:$0xff]
      %v863 = vld [vmem:[%s1 + $0x100] sm:$0xff]
      %v864 = vld [vmem:[%s1 + $0x108] sm:$0xff]
      %v865 = vld [vmem:[%s1 + $0x110] sm:$0xff]
      %v866 = vld [vmem:[%s1 + $0x118] sm:$0xff]
      %v867 = vld [vmem:[%s1 + $0x120] sm:$0xff]
      %v868 = vld [vmem:[%s1 + $0x128] sm:$0xff]
      %v869 = vld [vmem:[%s1 + $0x130] sm:$0xff]
      %v870 = vld [vmem:[%s1 + $0x138] sm:$0xff]
      %v871 = vld [vmem:[%s1 + $0x140] sm:$0xff]
      %v872 = vld [vmem:[%s1 + $0x148] sm:$0xff]
      %v873 = vld [vmem:[%s1 + $0x150] sm:$0xff]
      %v874 = vld [vmem:[%s1 + $0x158] sm:$0xff]
      %876 = vset.pattern.permute.xlu0 0
      %877 = vperm.xlu0 %876, %v831
      %v878 = vpop.permute.xlu0 %877
      %881 = vset.pattern.permute.xlu0 0
      %882 = vperm.xlu0 %881, %v832
      %v883 = vpop.permute.xlu0 %882
      %886 = vset.pattern.permute.xlu0 0
      %887 = vperm.xlu0 %886, %v833
      %v888 = vpop.permute.xlu0 %887
      %891 = vset.pattern.permute.xlu0 0
      %892 = vperm.xlu0 %891, %v834
      %v893 = vpop.permute.xlu0 %892
      %896 = vset.pattern.permute.xlu0 0
      %897 = vperm.xlu0 %896, %v835
      %v898 = vpop.permute.xlu0 %897
      %901 = vset.pattern.permute.xlu0 0
      %902 = vperm.xlu0 %901, %v836
      %v903 = vpop.permute.xlu0 %902
      %906 = vset.pattern.permute.xlu0 0
      %907 = vperm.xlu0 %906, %v837
      %v908 = vpop.permute.xlu0 %907
      %911 = vset.pattern.permute.xlu0 0
      %912 = vperm.xlu0 %911, %v838
      %v913 = vpop.permute.xlu0 %912
      %916 = vset.pattern.permute.xlu0 0
      %917 = vperm.xlu0 %916, %v839
      %v918 = vpop.permute.xlu0 %917
      %921 = vset.pattern.permute.xlu0 0
      %922 = vperm.xlu0 %921, %v840
      %v923 = vpop.permute.xlu0 %922
      %926 = vset.pattern.permute.xlu0 0
      %927 = vperm.xlu0 %926, %v841
      %v928 = vpop.permute.xlu0 %927
      %931 = vset.pattern.permute.xlu0 0
      %932 = vperm.xlu0 %931, %v842
      %v933 = vpop.permute.xlu0 %932
      %936 = vset.pattern.permute.xlu0 0
      %937 = vperm.xlu0 %936, %v843
      %v938 = vpop.permute.xlu0 %937
      %941 = vset.pattern.permute.xlu0 0
      %942 = vperm.xlu0 %941, %v844
      %v943 = vpop.permute.xlu0 %942
      %946 = vset.pattern.permute.xlu0 0
      %947 = vperm.xlu0 %946, %v845
      %v948 = vpop.permute.xlu0 %947
      %951 = vset.pattern.permute.xlu0 0
      %952 = vperm.xlu0 %951, %v846
      %v953 = vpop.permute.xlu0 %952
      %956 = vset.pattern.permute.xlu0 0
      %957 = vperm.xlu0 %956, %v847
      %v958 = vpop.permute.xlu0 %957
      %961 = vset.pattern.permute.xlu0 0
      %962 = vperm.xlu0 %961, %v848
      %v963 = vpop.permute.xlu0 %962
      %966 = vset.pattern.permute.xlu0 0
      %967 = vperm.xlu0 %966, %v849
      %v968 = vpop.permute.xlu0 %967
      %971 = vset.pattern.permute.xlu0 0
      %972 = vperm.xlu0 %971, %v850
      %v973 = vpop.permute.xlu0 %972
      %976 = vset.pattern.permute.xlu0 0
      %977 = vperm.xlu0 %976, %v851
      %v978 = vpop.permute.xlu0 %977
      %981 = vset.pattern.permute.xlu0 0
      %982 = vperm.xlu0 %981, %v852
      %v983 = vpop.permute.xlu0 %982
      %986 = vset.pattern.permute.xlu0 0
      %987 = vperm.xlu0 %986, %v853
      %v988 = vpop.permute.xlu0 %987
      %991 = vset.pattern.permute.xlu0 0
      %992 = vperm.xlu0 %991, %v854
      %v993 = vpop.permute.xlu0 %992
      %996 = vset.pattern.permute.xlu0 0
      %997 = vperm.xlu0 %996, %v855
      %v998 = vpop.permute.xlu0 %997
      %1001 = vset.pattern.permute.xlu0 0
      %1002 = vperm.xlu0 %1001, %v856
      %v1003 = vpop.permute.xlu0 %1002
      %1006 = vset.pattern.permute.xlu0 0
      %1007 = vperm.xlu0 %1006, %v857
      %v1008 = vpop.permute.xlu0 %1007
      %1011 = vset.pattern.permute.xlu0 0
      %1012 = vperm.xlu0 %1011, %v858
      %v1013 = vpop.permute.xlu0 %1012
      %1016 = vset.pattern.permute.xlu0 0
      %1017 = vperm.xlu0 %1016, %v859
      %v1018 = vpop.permute.xlu0 %1017
      %1021 = vset.pattern.permute.xlu0 0
      %1022 = vperm.xlu0 %1021, %v860
      %v1023 = vpop.permute.xlu0 %1022
      %1026 = vset.pattern.permute.xlu0 0
      %1027 = vperm.xlu0 %1026, %v861
      %v1028 = vpop.permute.xlu0 %1027
      %1031 = vset.pattern.permute.xlu0 0
      %1032 = vperm.xlu0 %1031, %v862
      %v1033 = vpop.permute.xlu0 %1032
      %1036 = vset.pattern.permute.xlu0 0
      %1037 = vperm.xlu0 %1036, %v863
      %v1038 = vpop.permute.xlu0 %1037
      %1041 = vset.pattern.permute.xlu0 0
      %1042 = vperm.xlu0 %1041, %v864
      %v1043 = vpop.permute.xlu0 %1042
      %1046 = vset.pattern.permute.xlu0 0
      %1047 = vperm.xlu0 %1046, %v865
      %v1048 = vpop.permute.xlu0 %1047
      %1051 = vset.pattern.permute.xlu0 0
      %1052 = vperm.xlu0 %1051, %v866
      %v1053 = vpop.permute.xlu0 %1052
      %1056 = vset.pattern.permute.xlu0 0
      %1057 = vperm.xlu0 %1056, %v867
      %v1058 = vpop.permute.xlu0 %1057
      %1061 = vset.pattern.permute.xlu0 0
      %1062 = vperm.xlu0 %1061, %v868
      %v1063 = vpop.permute.xlu0 %1062
      %1066 = vset.pattern.permute.xlu0 0
      %1067 = vperm.xlu0 %1066, %v869
      %v1068 = vpop.permute.xlu0 %1067
      %1071 = vset.pattern.permute.xlu0 0
      %1072 = vperm.xlu0 %1071, %v870
      %v1073 = vpop.permute.xlu0 %1072
      %1076 = vset.pattern.permute.xlu0 0
      %1077 = vperm.xlu0 %1076, %v871
      %v1078 = vpop.permute.xlu0 %1077
      %1081 = vset.pattern.permute.xlu0 0
      %1082 = vperm.xlu0 %1081, %v872
      %v1083 = vpop.permute.xlu0 %1082
      %1086 = vset.pattern.permute.xlu0 0
      %1087 = vperm.xlu0 %1086, %v873
      %v1088 = vpop.permute.xlu0 %1087
      %1091 = vset.pattern.permute.xlu0 0
      %1092 = vperm.xlu0 %1091, %v874
      %v1093 = vpop.permute.xlu0 %1092
      %v1095 = vmul.f32 %v787, %v878
      %v1096 = vmul.f32 %v788, %v883
      %v1097 = vmul.f32 %v789, %v888
      %v1098 = vmul.f32 %v790, %v893
      %v1099 = vmul.f32 %v791, %v898
      %v1100 = vmul.f32 %v792, %v903
      %v1101 = vmul.f32 %v793, %v908
      %v1102 = vmul.f32 %v794, %v913
      %v1103 = vmul.f32 %v795, %v918
      %v1104 = vmul.f32 %v796, %v923
      %v1105 = vmul.f32 %v797, %v928
      %v1106 = vmul.f32 %v798, %v933
      %v1107 = vmul.f32 %v799, %v938
      %v1108 = vmul.f32 %v800, %v943
      %v1109 = vmul.f32 %v801, %v948
      %v1110 = vmul.f32 %v802, %v953
      %v1111 = vmul.f32 %v803, %v958
      %v1112 = vmul.f32 %v804, %v963
      %v1113 = vmul.f32 %v805, %v968
      %v1114 = vmul.f32 %v806, %v973
      %v1115 = vmul.f32 %v807, %v978
      %v1116 = vmul.f32 %v808, %v983
      %v1117 = vmul.f32 %v809, %v988
      %v1118 = vmul.f32 %v810, %v993
      %v1119 = vmul.f32 %v811, %v998
      %v1120 = vmul.f32 %v812, %v1003
      %v1121 = vmul.f32 %v813, %v1008
      %v1122 = vmul.f32 %v814, %v1013
      %v1123 = vmul.f32 %v815, %v1018
      %v1124 = vmul.f32 %v816, %v1023
      %v1125 = vmul.f32 %v817, %v1028
      %v1126 = vmul.f32 %v818, %v1033
      %v1127 = vmul.f32 %v819, %v1038
      %v1128 = vmul.f32 %v820, %v1043
      %v1129 = vmul.f32 %v821, %v1048
      %v1130 = vmul.f32 %v822, %v1053
      %v1131 = vmul.f32 %v823, %v1058
      %v1132 = vmul.f32 %v824, %v1063
      %v1133 = vmul.f32 %v825, %v1068
      %v1134 = vmul.f32 %v826, %v1073
      %v1135 = vmul.f32 %v827, %v1078
      %v1136 = vmul.f32 %v828, %v1083
      %v1137 = vmul.f32 %v829, %v1088
      %v1138 = vmul.f32 %v830, %v1093
      %v1139 = vpack.c.bf16 %v1096, %v1095
      %v1140 = vpack.c.bf16 %v1098, %v1097
      %v1141 = vpack.c.bf16 %v1100, %v1099
      %v1142 = vpack.c.bf16 %v1102, %v1101
      %v1143 = vpack.c.bf16 %v1104, %v1103
      %v1144 = vpack.c.bf16 %v1106, %v1105
      %v1145 = vpack.c.bf16 %v1108, %v1107
      %v1146 = vpack.c.bf16 %v1110, %v1109
      %v1147 = vpack.c.bf16 %v1112, %v1111
      %v1148 = vpack.c.bf16 %v1114, %v1113
      %v1149 = vpack.c.bf16 %v1116, %v1115
      %v1150 = vpack.c.bf16 %v1118, %v1117
      %v1151 = vpack.c.bf16 %v1120, %v1119
      %v1152 = vpack.c.bf16 %v1122, %v1121
      %v1153 = vpack.c.bf16 %v1124, %v1123
      %v1154 = vpack.c.bf16 %v1126, %v1125
      %v1155 = vpack.c.bf16 %v1128, %v1127
      %v1156 = vpack.c.bf16 %v1130, %v1129
      %v1157 = vpack.c.bf16 %v1132, %v1131
      %v1158 = vpack.c.bf16 %v1134, %v1133
      %v1159 = vpack.c.bf16 %v1136, %v1135
      %v1160 = vpack.c.bf16 %v1138, %v1137
      %vm1161 = vcmask 130048
      %1162 = vst.msk [vmem:[#allocation2] sm:$0xff] %vm1161, %v1139
      %1163 = vst.msk [vmem:[#allocation2 + $0x8] sm:$0xff] %vm1161, %v1140
      %1164 = vst.msk [vmem:[#allocation2 + $0x10] sm:$0xff] %vm1161, %v1141
      %1165 = vst.msk [vmem:[#allocation2 + $0x18] sm:$0xff] %vm1161, %v1142
      %1166 = vst.msk [vmem:[#allocation2 + $0x20] sm:$0xff] %vm1161, %v1143
      %1167 = vst.msk [vmem:[#allocation2 + $0x28] sm:$0xff] %vm1161, %v1144
      %1168 = vst.msk [vmem:[#allocation2 + $0x30] sm:$0xff] %vm1161, %v1145
      %1169 = vst.msk [vmem:[#allocation2 + $0x38] sm:$0xff] %vm1161, %v1146
      %1170 = vst.msk [vmem:[#allocation2 + $0x40] sm:$0xff] %vm1161, %v1147
      %1171 = vst.msk [vmem:[#allocation2 + $0x48] sm:$0xff] %vm1161, %v1148
      %1172 = vst.msk [vmem:[#allocation2 + $0x50] sm:$0xff] %vm1161, %v1149
      %1173 = vst.msk [vmem:[#allocation2 + $0x58] sm:$0xff] %vm1161, %v1150
      %1174 = vst.msk [vmem:[#allocation2 + $0x60] sm:$0xff] %vm1161, %v1151
      %1175 = vst.msk [vmem:[#allocation2 + $0x68] sm:$0xff] %vm1161, %v1152
      %1176 = vst.msk [vmem:[#allocation2 + $0x70] sm:$0xff] %vm1161, %v1153
      %1177 = vst.msk [vmem:[#allocation2 + $0x78] sm:$0xff] %vm1161, %v1154
      %1178 = vst.msk [vmem:[#allocation2 + $0x80] sm:$0xff] %vm1161, %v1155
      %1179 = vst.msk [vmem:[#allocation2 + $0x88] sm:$0xff] %vm1161, %v1156
      %1180 = vst.msk [vmem:[#allocation2 + $0x90] sm:$0xff] %vm1161, %v1157
      %1181 = vst.msk [vmem:[#allocation2 + $0x98] sm:$0xff] %vm1161, %v1158
      %1182 = vst.msk [vmem:[#allocation2 + $0xa0] sm:$0xff] %vm1161, %v1159
      %1183 = vst.msk [vmem:[#allocation2 + $0xa8] sm:$0xff] %vm1161, %v1160
      %v1184 = vld [vmem:[#allocation2] sm:$0xff]
      %v1185 = vld [vmem:[#allocation2 + $0x8] sm:$0xff]
      %v1186 = vld [vmem:[#allocation2 + $0x10] sm:$0xff]
      %v1187 = vld [vmem:[#allocation2 + $0x18] sm:$0xff]
      %v1188 = vld [vmem:[#allocation2 + $0x20] sm:$0xf]
      %v1189 = vld [vmem:[%s4] sm:$0xf]
      %v1190 = vld [vmem:[%s4 + $0x4] sm:$0xf]
      %v1191 = vld [vmem:[#allocation2 + $0x28] sm:$0xf0]
      %v1192 = vld [vmem:[#allocation2 + $0x30] sm:$0xff]
      %v1193 = vld [vmem:[#allocation2 + $0x38] sm:$0xff]
      %v1194 = vld [vmem:[#allocation2 + $0x40] sm:$0xff]
      %v1195 = vld [vmem:[#allocation2 + $0x48] sm:$0xff]
      %s1196 = scalar_lea.vmem %s4, 8
      %v1197 = vld [vmem:[%s1196] sm:$0xf]
      %v1198 = vld [vmem:[%s1196 + $0x4] sm:$0xf]
      %vm1204 = vcmask 1043456
      %v1205 = vrot.slane %v1191, 4
      %v1206 = vrot.slane %v1192, 4
      %v1207 = vsel %vm1204, %v1205, %v1206
      %v1208 = vrot.slane %v1193, 4
      %v1209 = vsel %vm1204, %v1206, %v1208
      %v1210 = vrot.slane %v1194, 4
      %v1211 = vsel %vm1204, %v1208, %v1210
      %v1212 = vrot.slane %v1195, 4
      %v1213 = vsel %vm1204, %v1210, %v1212
      %v1216 = vunpack.c.l.b16 %v1197
      %v1217 = vunpack.c.l.b16 %v1198
      %v1218 = vpack.c.b16 %v1217, %v1216
      %v1221 = vsel %vm1161, %v1207, 0
      %v1224 = vsel %vm1161, %v1209, 0
      %v1227 = vsel %vm1161, %v1211, 0
      %v1230 = vsel %vm1161, %v1213, 0
      %v1233 = vsel %vm1161, %v1212, 0
      %1235 = vmatprep.subr.bf16.mxu0 0
      %1236 = vmatpush1.bf16.msra.mxu0 %v1218
      %1237 = vmatprep.subr.bf16.mxu0 0
      %1238 = vmatpush1.bf16.msra.mxu0 0
      %1239 = vmatprep.subr.bf16.mxu0 0
      %1240 = vmatpush1.bf16.msra.mxu0 0
      %1241 = vmatprep.subr.bf16.mxu0 0
      %1242 = vmatpush1.bf16.msra.mxu0 0
      %1243 = vmatprep.subr.bf16.mxu0 0
      %1244 = vmatpush1.bf16.msra.mxu0 0
      %1245 = vmatprep.subr.bf16.mxu0 0
      %1246 = vmatpush1.bf16.msra.mxu0 0
      %1247 = vmatprep.subr.bf16.mxu0 0
      %1248 = vmatpush1.bf16.msra.mxu0 0
      %1249 = vmatprep.subr.bf16.mxu0 0
      %1250 = vmatpush1.bf16.msra.mxu0 0
      %1251 = vmatprep.subr.bf16.mxu0 0
      %1252 = vmatpush1.bf16.msra.mxu0 0
      %1253 = vmatprep.subr.bf16.mxu0 0
      %1254 = vmatpush1.bf16.msra.mxu0 0
      %1255 = vmatprep.subr.bf16.mxu0 0
      %1256 = vmatpush1.bf16.msra.mxu0 0
      %1257 = vmatprep.subr.bf16.mxu0 0
      %1258 = vmatpush1.bf16.msra.mxu0 0
      %1259 = vmatprep.subr.bf16.mxu0 0
      %1260 = vmatpush1.bf16.msra.mxu0 0
      %1261 = vmatprep.subr.bf16.mxu0 0
      %1262 = vmatpush1.bf16.msra.mxu0 0
      %1263 = vmatprep.subr.bf16.mxu0 0
      %1264 = vmatpush1.bf16.msra.mxu0 0
      %1265 = vmatprep.subr.bf16.mxu0 0
      %1266 = vmatpush1.bf16.msra.mxu0 0
      %1267 = vmatprep.mubr.bf16.mxu0 0
      %1268 = vmatmul.mubr.bf16.gmra.mrb[0].mxu0 %v1221
      %v1269 = vpop.f32.mrb[0].mxu0
      %v1270 = vadd.f32 0.0, %v1269
      %v1271 = vpop.f32.mrb[0].mxu0
      %v1272 = vpop.f32.mrb[0].mxu0
      %v1273 = vadd.f32 0.0, %v1272
      %v1274 = vpop.f32.mrb[0].mxu0
      %1275 = vmatprep.mubr.bf16.mxu0 0
      %1276 = vmatmul.mubr.bf16.gmra.mrb[0].mxu0 %v1224
      %v1277 = vpop.f32.mrb[0].mxu0
      %v1278 = vadd.f32 0.0, %v1277
      %v1279 = vpop.f32.mrb[0].mxu0
      %v1280 = vpop.f32.mrb[0].mxu0
      %v1281 = vadd.f32 0.0, %v1280
      %v1282 = vpop.f32.mrb[0].mxu0
      %1283 = vmatprep.mubr.bf16.mxu0 0
      %1284 = vmatmul.mubr.bf16.gmra.mrb[0].mxu0 %v1227
      %v1285 = vpop.f32.mrb[0].mxu0
      %v1286 = vadd.f32 0.0, %v1285
      %v1287 = vpop.f32.mrb[0].mxu0
      %v1288 = vpop.f32.mrb[0].mxu0
      %v1289 = vadd.f32 0.0, %v1288
      %v1290 = vpop.f32.mrb[0].mxu0
      %1291 = vmatprep.mubr.bf16.mxu0 0
      %1292 = vmatmul.mubr.bf16.gmra.mrb[0].mxu0 %v1230
      %v1293 = vpop.f32.mrb[0].mxu0
      %v1294 = vadd.f32 0.0, %v1293
      %v1295 = vpop.f32.mrb[0].mxu0
      %v1296 = vpop.f32.mrb[0].mxu0
      %v1297 = vadd.f32 0.0, %v1296
      %v1298 = vpop.f32.mrb[0].mxu0
      %1299 = vmatprep.mubr.bf16.mxu0 0
      %1300 = vmatmul.mubr.bf16.gmra.mrb[0].mxu0 %v1233
      %v1301 = vpop.f32.mrb[0].mxu0
      %v1302 = vadd.f32 0.0, %v1301
      %v1303 = vpop.f32.mrb[0].mxu0
      %v1304 = vpop.f32.mrb[0].mxu0
      %v1305 = vpop.f32.mrb[0].mxu0
      %1306 = vdwg.mxu0
      %v1309 = vunpack.c.l.b16 %v1189
      %v1310 = vunpack.c.l.b16 %v1190
      %v1311 = vpack.c.b16 %v1310, %v1309
      %v1314 = vsel %vm1161, %v1184, 0
      %v1317 = vsel %vm1161, %v1185, 0
      %v1320 = vsel %vm1161, %v1186, 0
      %v1323 = vsel %vm1161, %v1187, 0
      %v1326 = vsel %vm1161, %v1188, 0
      %1328 = vmatprep.subr.bf16.mxu0 0
      %1329 = vmatpush1.bf16.msra.mxu0 %v1311
      %1330 = vmatprep.subr.bf16.mxu0 0
      %1331 = vmatpush1.bf16.msra.mxu0 0
      %1332 = vmatprep.subr.bf16.mxu0 0
      %1333 = vmatpush1.bf16.msra.mxu0 0
      %1334 = vmatprep.subr.bf16.mxu0 0
      %1335 = vmatpush1.bf16.msra.mxu0 0
      %1336 = vmatprep.subr.bf16.mxu0 0
      %1337 = vmatpush1.bf16.msra.mxu0 0
      %1338 = vmatprep.subr.bf16.mxu0 0
      %1339 = vmatpush1.bf16.msra.mxu0 0
      %1340 = vmatprep.subr.bf16.mxu0 0
      %1341 = vmatpush1.bf16.msra.mxu0 0
      %1342 = vmatprep.subr.bf16.mxu0 0
      %1343 = vmatpush1.bf16.msra.mxu0 0
      %1344 = vmatprep.subr.bf16.mxu0 0
      %1345 = vmatpush1.bf16.msra.mxu0 0
      %1346 = vmatprep.subr.bf16.mxu0 0
      %1347 = vmatpush1.bf16.msra.mxu0 0
      %1348 = vmatprep.subr.bf16.mxu0 0
      %1349 = vmatpush1.bf16.msra.mxu0 0
      %1350 = vmatprep.subr.bf16.mxu0 0
      %1351 = vmatpush1.bf16.msra.mxu0 0
      %1352 = vmatprep.subr.bf16.mxu0 0
      %1353 = vmatpush1.bf16.msra.mxu0 0
      %1354 = vmatprep.subr.bf16.mxu0 0
      %1355 = vmatpush1.bf16.msra.mxu0 0
      %1356 = vmatprep.subr.bf16.mxu0 0
      %1357 = vmatpush1.bf16.msra.mxu0 0
      %1358 = vmatprep.subr.bf16.mxu0 0
      %1359 = vmatpush1.bf16.msra.mxu0 0
      %1360 = vmatprep.mubr.bf16.mxu0 0
      %1361 = vmatmul.mubr.bf16.gmra.mrb[0].mxu0 %v1314
      %v1362 = vpop.f32.mrb[0].mxu0
      %v1363 = vadd.f32 %v1270, %v1362
      %v1364 = vpop.f32.mrb[0].mxu0
      %v1365 = vpop.f32.mrb[0].mxu0
      %v1366 = vadd.f32 %v1273, %v1365
      %v1367 = vpop.f32.mrb[0].mxu0
      %1368 = vmatprep.mubr.bf16.mxu0 0
      %1369 = vmatmul.mubr.bf16.gmra.mrb[0].mxu0 %v1317
      %v1370 = vpop.f32.mrb[0].mxu0
      %v1371 = vadd.f32 %v1278, %v1370
      %v1372 = vpop.f32.mrb[0].mxu0
      %v1373 = vpop.f32.mrb[0].mxu0
      %v1374 = vadd.f32 %v1281, %v1373
      %v1375 = vpop.f32.mrb[0].mxu0
      %1376 = vmatprep.mubr.bf16.mxu0 0
      %1377 = vmatmul.mubr.bf16.gmra.mrb[0].mxu0 %v1320
      %v1378 = vpop.f32.mrb[0].mxu0
      %v1379 = vadd.f32 %v1286, %v1378
      %v1380 = vpop.f32.mrb[0].mxu0
      %v1381 = vpop.f32.mrb[0].mxu0
      %v1382 = vadd.f32 %v1289, %v1381
      %v1383 = vpop.f32.mrb[0].mxu0
      %1384 = vmatprep.mubr.bf16.mxu0 0
      %1385 = vmatmul.mubr.bf16.gmra.mrb[0].mxu0 %v1323
      %v1386 = vpop.f32.mrb[0].mxu0
      %v1387 = vadd.f32 %v1294, %v1386
      %v1388 = vpop.f32.mrb[0].mxu0
      %v1389 = vpop.f32.mrb[0].mxu0
      %v1390 = vadd.f32 %v1297, %v1389
      %v1391 = vpop.f32.mrb[0].mxu0
      %1392 = vmatprep.mubr.bf16.mxu0 0
      %1393 = vmatmul.mubr.bf16.gmra.mrb[0].mxu0 %v1326
      %v1394 = vpop.f32.mrb[0].mxu0
      %v1395 = vadd.f32 %v1302, %v1394
      %v1396 = vpop.f32.mrb[0].mxu0
      %v1397 = vpop.f32.mrb[0].mxu0
      %v1398 = vpop.f32.mrb[0].mxu0
      %1399 = vdwg.mxu0
      %v1400 = vld [vmem:[#allocation2 + $0x20] sm:$0x1f]
      %s1401 = scalar_lea.vmem %s4, 16
      %v1402 = vld [vmem:[%s1401] sm:$0xf]
      %v1403 = vld [vmem:[%s1401 + $0x4] sm:$0xf]
      %vm1404 = vsmask.f32 7424
      %v1405 = vshrl.u32 %v1184, 16
      %v1407 = vshll.u32 %v1184, 16
      %v1409 = vrot.slane %v1407, 1
      %v1410 = vor.u32 %v1405, %v1409
      %v1411 = vshll.u32 %v1185, 16
      %v1413 = vrot.slane %v1411, 1
      %v1414 = vsel %vm1404, %v1410, %v1413
      %v1415 = vshrl.u32 %v1185, 16
      %v1417 = vor.u32 %v1415, %v1413
      %v1418 = vshll.u32 %v1186, 16
      %v1420 = vrot.slane %v1418, 1
      %v1421 = vsel %vm1404, %v1417, %v1420
      %v1422 = vshrl.u32 %v1186, 16
      %v1424 = vor.u32 %v1422, %v1420
      %v1425 = vshll.u32 %v1187, 16
      %v1427 = vrot.slane %v1425, 1
      %v1428 = vsel %vm1404, %v1424, %v1427
      %v1429 = vshrl.u32 %v1187, 16
      %v1431 = vor.u32 %v1429, %v1427
      %v1433 = vshll.u32 %v1400, 16
      %v1435 = vrot.slane %v1433, 1
      %v1436 = vsel %vm1404, %v1431, %v1435
      %v1437 = vshrl.u32 %v1400, 16
      %v1439 = vor.u32 %v1437, %v1435
      %v1442 = vunpack.c.l.b16 %v1402
      %v1443 = vunpack.c.l.b16 %v1403
      %v1444 = vpack.c.b16 %v1443, %v1442
      %v1447 = vsel %vm1161, %v1414, 0
      %v1450 = vsel %vm1161, %v1421, 0
      %v1453 = vsel %vm1161, %v1428, 0
      %v1456 = vsel %vm1161, %v1436, 0
      %v1459 = vsel %vm1161, %v1439, 0
      %1461 = vmatprep.subr.bf16.mxu0 0
      %1462 = vmatpush1.bf16.msra.mxu0 %v1444
      %1463 = vmatprep.subr.bf16.mxu0 0
      %1464 = vmatpush1.bf16.msra.mxu0 0
      %1465 = vmatprep.subr.bf16.mxu0 0
      %1466 = vmatpush1.bf16.msra.mxu0 0
      %1467 = vmatprep.subr.bf16.mxu0 0
      %1468 = vmatpush1.bf16.msra.mxu0 0
      %1469 = vmatprep.subr.bf16.mxu0 0
      %1470 = vmatpush1.bf16.msra.mxu0 0
      %1471 = vmatprep.subr.bf16.mxu0 0
      %1472 = vmatpush1.bf16.msra.mxu0 0
      %1473 = vmatprep.subr.bf16.mxu0 0
      %1474 = vmatpush1.bf16.msra.mxu0 0
      %1475 = vmatprep.subr.bf16.mxu0 0
      %1476 = vmatpush1.bf16.msra.mxu0 0
      %1477 = vmatprep.subr.bf16.mxu0 0
      %1478 = vmatpush1.bf16.msra.mxu0 0
      %1479 = vmatprep.subr.bf16.mxu0 0
      %1480 = vmatpush1.bf16.msra.mxu0 0
      %1481 = vmatprep.subr.bf16.mxu0 0
      %1482 = vmatpush1.bf16.msra.mxu0 0
      %1483 = vmatprep.subr.bf16.mxu0 0
      %1484 = vmatpush1.bf16.msra.mxu0 0
      %1485 = vmatprep.subr.bf16.mxu0 0
      %1486 = vmatpush1.bf16.msra.mxu0 0
      %1487 = vmatprep.subr.bf16.mxu0 0
      %1488 = vmatpush1.bf16.msra.mxu0 0
      %1489 = vmatprep.subr.bf16.mxu0 0
      %1490 = vmatpush1.bf16.msra.mxu0 0
      %1491 = vmatprep.subr.bf16.mxu0 0
      %1492 = vmatpush1.bf16.msra.mxu0 0
      %1493 = vmatprep.mubr.bf16.mxu0 0
      %1494 = vmatmul.mubr.bf16.gmra.mrb[0].mxu0 %v1447
      %v1495 = vpop.f32.mrb[0].mxu0
      %v1496 = vadd.f32 0.0, %v1495
      %v1497 = vpop.f32.mrb[0].mxu0
      %v1498 = vpop.f32.mrb[0].mxu0
      %v1499 = vadd.f32 0.0, %v1498
      %v1500 = vpop.f32.mrb[0].mxu0
      %1501 = vmatprep.mubr.bf16.mxu0 0
      %1502 = vmatmul.mubr.bf16.gmra.mrb[0].mxu0 %v1450
      %v1503 = vpop.f32.mrb[0].mxu0
      %v1504 = vadd.f32 0.0, %v1503
      %v1505 = vpop.f32.mrb[0].mxu0
      %v1506 = vpop.f32.mrb[0].mxu0
      %v1507 = vadd.f32 0.0, %v1506
      %v1508 = vpop.f32.mrb[0].mxu0
      %1509 = vmatprep.mubr.bf16.mxu0 0
      %1510 = vmatmul.mubr.bf16.gmra.mrb[0].mxu0 %v1453
      %v1511 = vpop.f32.mrb[0].mxu0
      %v1512 = vadd.f32 0.0, %v1511
      %v1513 = vpop.f32.mrb[0].mxu0
      %v1514 = vpop.f32.mrb[0].mxu0
      %v1515 = vadd.f32 0.0, %v1514
      %v1516 = vpop.f32.mrb[0].mxu0
      %1517 = vmatprep.mubr.bf16.mxu0 0
      %1518 = vmatmul.mubr.bf16.gmra.mrb[0].mxu0 %v1456
      %v1519 = vpop.f32.mrb[0].mxu0
      %v1520 = vadd.f32 0.0, %v1519
      %v1521 = vpop.f32.mrb[0].mxu0
      %v1522 = vpop.f32.mrb[0].mxu0
      %v1523 = vadd.f32 0.0, %v1522
      %v1524 = vpop.f32.mrb[0].mxu0
      %1525 = vmatprep.mubr.bf16.mxu0 0
      %1526 = vmatmul.mubr.bf16.gmra.mrb[0].mxu0 %v1459
      %v1527 = vpop.f32.mrb[0].mxu0
      %v1528 = vadd.f32 0.0, %v1527
      %v1529 = vpop.f32.mrb[0].mxu0
      %v1530 = vpop.f32.mrb[0].mxu0
      %v1531 = vpop.f32.mrb[0].mxu0
      %1532 = vdwg.mxu0
      %v1533 = vadd.f32 %v1363, %v1496
      %v1534 = vadd.f32 %v1366, %v1499
      %v1535 = vadd.f32 %v1371, %v1504
      %v1536 = vadd.f32 %v1374, %v1507
      %v1537 = vadd.f32 %v1379, %v1512
      %v1538 = vadd.f32 %v1382, %v1515
      %v1539 = vadd.f32 %v1387, %v1520
      %v1540 = vadd.f32 %v1390, %v1523
      %v1541 = vadd.f32 %v1395, %v1528
      %v1542 = vld [vmem:[#allocation2 + $0x58] sm:$0xff]
      %v1543 = vld [vmem:[#allocation2 + $0x60] sm:$0xff]
      %v1544 = vld [vmem:[#allocation2 + $0x68] sm:$0xff]
      %v1545 = vld [vmem:[#allocation2 + $0x70] sm:$0xff]
      %v1546 = vld [vmem:[#allocation2 + $0x78] sm:$0xf]
      %s1547 = scalar_lea.vmem %s4, 24
      %v1548 = vld [vmem:[%s1547] sm:$0xf]
      %v1549 = vld [vmem:[%s1547 + $0x4] sm:$0xf]
      %v1552 = vunpack.c.l.b16 %v1548
      %v1553 = vunpack.c.l.b16 %v1549
      %v1554 = vpack.c.b16 %v1553, %v1552
      %v1557 = vsel %vm1161, %v1542, 0
      %v1560 = vsel %vm1161, %v1543, 0
      %v1563 = vsel %vm1161, %v1544, 0
      %v1566 = vsel %vm1161, %v1545, 0
      %v1569 = vsel %vm1161, %v1546, 0
      %1571 = vmatprep.subr.bf16.mxu0 0
      %1572 = vmatpush1.bf16.msra.mxu0 %v1554
      %1573 = vmatprep.subr.bf16.mxu0 0
      %1574 = vmatpush1.bf16.msra.mxu0 0
      %1575 = vmatprep.subr.bf16.mxu0 0
      %1576 = vmatpush1.bf16.msra.mxu0 0
      %1577 = vmatprep.subr.bf16.mxu0 0
      %1578 = vmatpush1.bf16.msra.mxu0 0
      %1579 = vmatprep.subr.bf16.mxu0 0
      %1580 = vmatpush1.bf16.msra.mxu0 0
      %1581 = vmatprep.subr.bf16.mxu0 0
      %1582 = vmatpush1.bf16.msra.mxu0 0
      %1583 = vmatprep.subr.bf16.mxu0 0
      %1584 = vmatpush1.bf16.msra.mxu0 0
      %1585 = vmatprep.subr.bf16.mxu0 0
      %1586 = vmatpush1.bf16.msra.mxu0 0
      %1587 = vmatprep.subr.bf16.mxu0 0
      %1588 = vmatpush1.bf16.msra.mxu0 0
      %1589 = vmatprep.subr.bf16.mxu0 0
      %1590 = vmatpush1.bf16.msra.mxu0 0
      %1591 = vmatprep.subr.bf16.mxu0 0
      %1592 = vmatpush1.bf16.msra.mxu0 0
      %1593 = vmatprep.subr.bf16.mxu0 0
      %1594 = vmatpush1.bf16.msra.mxu0 0
      %1595 = vmatprep.subr.bf16.mxu0 0
      %1596 = vmatpush1.bf16.msra.mxu0 0
      %1597 = vmatprep.subr.bf16.mxu0 0
      %1598 = vmatpush1.bf16.msra.mxu0 0
      %1599 = vmatprep.subr.bf16.mxu0 0
      %1600 = vmatpush1.bf16.msra.mxu0 0
      %1601 = vmatprep.subr.bf16.mxu0 0
      %1602 = vmatpush1.bf16.msra.mxu0 0
      %1603 = vmatprep.mubr.bf16.mxu0 0
      %1604 = vmatmul.mubr.bf16.gmra.mrb[0].mxu0 %v1557
      %v1605 = vpop.f32.mrb[0].mxu0
      %v1606 = vadd.f32 0.0, %v1605
      %v1607 = vpop.f32.mrb[0].mxu0
      %v1608 = vpop.f32.mrb[0].mxu0
      %v1609 = vadd.f32 0.0, %v1608
      %v1610 = vpop.f32.mrb[0].mxu0
      %1611 = vmatprep.mubr.bf16.mxu0 0
      %1612 = vmatmul.mubr.bf16.gmra.mrb[0].mxu0 %v1560
      %v1613 = vpop.f32.mrb[0].mxu0
      %v1614 = vadd.f32 0.0, %v1613
      %v1615 = vpop.f32.mrb[0].mxu0
      %v1616 = vpop.f32.mrb[0].mxu0
      %v1617 = vadd.f32 0.0, %v1616
      %v1618 = vpop.f32.mrb[0].mxu0
      %1619 = vmatprep.mubr.bf16.mxu0 0
      %1620 = vmatmul.mubr.bf16.gmra.mrb[0].mxu0 %v1563
      %v1621 = vpop.f32.mrb[0].mxu0
      %v1622 = vadd.f32 0.0, %v1621
      %v1623 = vpop.f32.mrb[0].mxu0
      %v1624 = vpop.f32.mrb[0].mxu0
      %v1625 = vadd.f32 0.0, %v1624
      %v1626 = vpop.f32.mrb[0].mxu0
      %1627 = vmatprep.mubr.bf16.mxu0 0
      %1628 = vmatmul.mubr.bf16.gmra.mrb[0].mxu0 %v1566
      %v1629 = vpop.f32.mrb[0].mxu0
      %v1630 = vadd.f32 0.0, %v1629
      %v1631 = vpop.f32.mrb[0].mxu0
      %v1632 = vpop.f32.mrb[0].mxu0
      %v1633 = vadd.f32 0.0, %v1632
      %v1634 = vpop.f32.mrb[0].mxu0
      %1635 = vmatprep.mubr.bf16.mxu0 0
      %1636 = vmatmul.mubr.bf16.gmra.mrb[0].mxu0 %v1569
      %v1637 = vpop.f32.mrb[0].mxu0
      %v1638 = vadd.f32 0.0, %v1637
      %v1639 = vpop.f32.mrb[0].mxu0
      %v1640 = vpop.f32.mrb[0].mxu0
      %v1641 = vpop.f32.mrb[0].mxu0
      %1642 = vdwg.mxu0
      %v1643 = vadd.f32 %v1533, %v1606
      %v1644 = vadd.f32 %v1534, %v1609
      %v1645 = vadd.f32 %v1535, %v1614
      %v1646 = vadd.f32 %v1536, %v1617
      %v1647 = vadd.f32 %v1537, %v1622
      %v1648 = vadd.f32 %v1538, %v1625
      %v1649 = vadd.f32 %v1539, %v1630
      %v1650 = vadd.f32 %v1540, %v1633
      %v1651 = vadd.f32 %v1541, %v1638
      %v1652 = vld [vmem:[#allocation2 + $0x80] sm:$0xf0]
      %v1653 = vld [vmem:[#allocation2 + $0x88] sm:$0xff]
      %v1654 = vld [vmem:[#allocation2 + $0x90] sm:$0xff]
      %v1655 = vld [vmem:[#allocation2 + $0x98] sm:$0xff]
      %v1656 = vld [vmem:[#allocation2 + $0xa0] sm:$0xff]
      %s1657 = scalar_lea.vmem %s4, 32
      %v1658 = vld [vmem:[%s1657] sm:$0xf]
      %v1659 = vld [vmem:[%s1657 + $0x4] sm:$0xf]
      %v1665 = vrot.slane %v1652, 4
      %v1666 = vrot.slane %v1653, 4
      %v1667 = vsel %vm1204, %v1665, %v1666
      %v1668 = vrot.slane %v1654, 4
      %v1669 = vsel %vm1204, %v1666, %v1668
      %v1670 = vrot.slane %v1655, 4
      %v1671 = vsel %vm1204, %v1668, %v1670
      %v1672 = vrot.slane %v1656, 4
      %v1673 = vsel %vm1204, %v1670, %v1672
      %v1676 = vunpack.c.l.b16 %v1658
      %v1677 = vunpack.c.l.b16 %v1659
      %v1678 = vpack.c.b16 %v1677, %v1676
      %v1681 = vsel %vm1161, %v1667, 0
      %v1684 = vsel %vm1161, %v1669, 0
      %v1687 = vsel %vm1161, %v1671, 0
      %v1690 = vsel %vm1161, %v1673, 0
      %v1693 = vsel %vm1161, %v1672, 0
      %1695 = vmatprep.subr.bf16.mxu0 0
      %1696 = vmatpush1.bf16.msra.mxu0 %v1678
      %1697 = vmatprep.subr.bf16.mxu0 0
      %1698 = vmatpush1.bf16.msra.mxu0 0
      %1699 = vmatprep.subr.bf16.mxu0 0
      %1700 = vmatpush1.bf16.msra.mxu0 0
      %1701 = vmatprep.subr.bf16.mxu0 0
      %1702 = vmatpush1.bf16.msra.mxu0 0
      %1703 = vmatprep.subr.bf16.mxu0 0
      %1704 = vmatpush1.bf16.msra.mxu0 0
      %1705 = vmatprep.subr.bf16.mxu0 0
      %1706 = vmatpush1.bf16.msra.mxu0 0
      %1707 = vmatprep.subr.bf16.mxu0 0
      %1708 = vmatpush1.bf16.msra.mxu0 0
      %1709 = vmatprep.subr.bf16.mxu0 0
      %1710 = vmatpush1.bf16.msra.mxu0 0
      %1711 = vmatprep.subr.bf16.mxu0 0
      %1712 = vmatpush1.bf16.msra.mxu0 0
      %1713 = vmatprep.subr.bf16.mxu0 0
      %1714 = vmatpush1.bf16.msra.mxu0 0
      %1715 = vmatprep.subr.bf16.mxu0 0
      %1716 = vmatpush1.bf16.msra.mxu0 0
      %1717 = vmatprep.subr.bf16.mxu0 0
      %1718 = vmatpush1.bf16.msra.mxu0 0
      %1719 = vmatprep.subr.bf16.mxu0 0
      %1720 = vmatpush1.bf16.msra.mxu0 0
      %1721 = vmatprep.subr.bf16.mxu0 0
      %1722 = vmatpush1.bf16.msra.mxu0 0
      %1723 = vmatprep.subr.bf16.mxu0 0
      %1724 = vmatpush1.bf16.msra.mxu0 0
      %1725 = vmatprep.subr.bf16.mxu0 0
      %1726 = vmatpush1.bf16.msra.mxu0 0
      %1727 = vmatprep.mubr.bf16.mxu0 0
      %1728 = vmatmul.mubr.bf16.gmra.mrb[0].mxu0 %v1681
      %v1729 = vpop.f32.mrb[0].mxu0
      %v1730 = vadd.f32 0.0, %v1729
      %v1731 = vpop.f32.mrb[0].mxu0
      %v1732 = vpop.f32.mrb[0].mxu0
      %v1733 = vadd.f32 0.0, %v1732
      %v1734 = vpop.f32.mrb[0].mxu0
      %1735 = vmatprep.mubr.bf16.mxu0 0
      %1736 = vmatmul.mubr.bf16.gmra.mrb[0].mxu0 %v1684
      %v1737 = vpop.f32.mrb[0].mxu0
      %v1738 = vadd.f32 0.0, %v1737
      %v1739 = vpop.f32.mrb[0].mxu0
      %v1740 = vpop.f32.mrb[0].mxu0
      %v1741 = vadd.f32 0.0, %v1740
      %v1742 = vpop.f32.mrb[0].mxu0
      %1743 = vmatprep.mubr.bf16.mxu0 0
      %1744 = vmatmul.mubr.bf16.gmra.mrb[0].mxu0 %v1687
      %v1745 = vpop.f32.mrb[0].mxu0
      %v1746 = vadd.f32 0.0, %v1745
      %v1747 = vpop.f32.mrb[0].mxu0
      %v1748 = vpop.f32.mrb[0].mxu0
      %v1749 = vadd.f32 0.0, %v1748
      %v1750 = vpop.f32.mrb[0].mxu0
      %1751 = vmatprep.mubr.bf16.mxu0 0
      %1752 = vmatmul.mubr.bf16.gmra.mrb[0].mxu0 %v1690
      %v1753 = vpop.f32.mrb[0].mxu0
      %v1754 = vadd.f32 0.0, %v1753
      %v1755 = vpop.f32.mrb[0].mxu0
      %v1756 = vpop.f32.mrb[0].mxu0
      %v1757 = vadd.f32 0.0, %v1756
      %v1758 = vpop.f32.mrb[0].mxu0
      %1759 = vmatprep.mubr.bf16.mxu0 0
      %1760 = vmatmul.mubr.bf16.gmra.mrb[0].mxu0 %v1693
      %v1761 = vpop.f32.mrb[0].mxu0
      %v1762 = vadd.f32 0.0, %v1761
      %v1763 = vpop.f32.mrb[0].mxu0
      %v1764 = vpop.f32.mrb[0].mxu0
      %v1765 = vpop.f32.mrb[0].mxu0
      %1766 = vdwg.mxu0
      %v1767 = vadd.f32 %v1643, %v1730
      %v1768 = vadd.f32 %v1644, %v1733
      %v1769 = vadd.f32 %v1645, %v1738
      %v1770 = vadd.f32 %v1646, %v1741
      %v1771 = vadd.f32 %v1647, %v1746
      %v1772 = vadd.f32 %v1648, %v1749
      %v1773 = vadd.f32 %v1649, %v1754
      %v1774 = vadd.f32 %v1650, %v1757
      %v1775 = vadd.f32 %v1651, %v1762
      %v1776 = vld [vmem:[#allocation2 + $0x78] sm:$0x1f]
      %s1777 = scalar_lea.vmem %s4, 40
      %v1778 = vld [vmem:[%s1777] sm:$0xf]
      %v1779 = vld [vmem:[%s1777 + $0x4] sm:$0xf]
      %v1780 = vshrl.u32 %v1542, 16
      %v1782 = vshll.u32 %v1542, 16
      %v1784 = vrot.slane %v1782, 1
      %v1785 = vor.u32 %v1780, %v1784
      %v1786 = vshll.u32 %v1543, 16
      %v1788 = vrot.slane %v1786, 1
      %v1789 = vsel %vm1404, %v1785, %v1788
      %v1790 = vshrl.u32 %v1543, 16
      %v1792 = vor.u32 %v1790, %v1788
      %v1793 = vshll.u32 %v1544, 16
      %v1795 = vrot.slane %v1793, 1
      %v1796 = vsel %vm1404, %v1792, %v1795
      %v1797 = vshrl.u32 %v1544, 16
      %v1799 = vor.u32 %v1797, %v1795
      %v1800 = vshll.u32 %v1545, 16
      %v1802 = vrot.slane %v1800, 1
      %v1803 = vsel %vm1404, %v1799, %v1802
      %v1804 = vshrl.u32 %v1545, 16
      %v1806 = vor.u32 %v1804, %v1802
      %v1808 = vshll.u32 %v1776, 16
      %v1810 = vrot.slane %v1808, 1
      %v1811 = vsel %vm1404, %v1806, %v1810
      %v1812 = vshrl.u32 %v1776, 16
      %v1814 = vor.u32 %v1812, %v1810
      %v1817 = vunpack.c.l.b16 %v1778
      %v1818 = vunpack.c.l.b16 %v1779
      %v1819 = vpack.c.b16 %v1818, %v1817
      %v1822 = vsel %vm1161, %v1789, 0
      %v1825 = vsel %vm1161, %v1796, 0
      %v1828 = vsel %vm1161, %v1803, 0
      %v1831 = vsel %vm1161, %v1811, 0
      %v1834 = vsel %vm1161, %v1814, 0
      %1836 = vmatprep.subr.bf16.mxu0 0
      %1837 = vmatpush1.bf16.msra.mxu0 %v1819
      %1838 = vmatprep.subr.bf16.mxu0 0
      %1839 = vmatpush1.bf16.msra.mxu0 0
      %1840 = vmatprep.subr.bf16.mxu0 0
      %1841 = vmatpush1.bf16.msra.mxu0 0
      %1842 = vmatprep.subr.bf16.mxu0 0
      %1843 = vmatpush1.bf16.msra.mxu0 0
      %1844 = vmatprep.subr.bf16.mxu0 0
      %1845 = vmatpush1.bf16.msra.mxu0 0
      %1846 = vmatprep.subr.bf16.mxu0 0
      %1847 = vmatpush1.bf16.msra.mxu0 0
      %1848 = vmatprep.subr.bf16.mxu0 0
      %1849 = vmatpush1.bf16.msra.mxu0 0
      %1850 = vmatprep.subr.bf16.mxu0 0
      %1851 = vmatpush1.bf16.msra.mxu0 0
      %1852 = vmatprep.subr.bf16.mxu0 0
      %1853 = vmatpush1.bf16.msra.mxu0 0
      %1854 = vmatprep.subr.bf16.mxu0 0
      %1855 = vmatpush1.bf16.msra.mxu0 0
      %1856 = vmatprep.subr.bf16.mxu0 0
      %1857 = vmatpush1.bf16.msra.mxu0 0
      %1858 = vmatprep.subr.bf16.mxu0 0
      %1859 = vmatpush1.bf16.msra.mxu0 0
      %1860 = vmatprep.subr.bf16.mxu0 0
      %1861 = vmatpush1.bf16.msra.mxu0 0
      %1862 = vmatprep.subr.bf16.mxu0 0
      %1863 = vmatpush1.bf16.msra.mxu0 0
      %1864 = vmatprep.subr.bf16.mxu0 0
      %1865 = vmatpush1.bf16.msra.mxu0 0
      %1866 = vmatprep.subr.bf16.mxu0 0
      %1867 = vmatpush1.bf16.msra.mxu0 0
      %1868 = vmatprep.mubr.bf16.mxu0 0
      %1869 = vmatmul.mubr.bf16.gmra.mrb[0].mxu0 %v1822
      %v1870 = vpop.f32.mrb[0].mxu0
      %v1871 = vadd.f32 0.0, %v1870
      %v1872 = vpop.f32.mrb[0].mxu0
      %v1873 = vpop.f32.mrb[0].mxu0
      %v1874 = vadd.f32 0.0, %v1873
      %v1875 = vpop.f32.mrb[0].mxu0
      %1876 = vmatprep.mubr.bf16.mxu0 0
      %1877 = vmatmul.mubr.bf16.gmra.mrb[0].mxu0 %v1825
      %v1878 = vpop.f32.mrb[0].mxu0
      %v1879 = vadd.f32 0.0, %v1878
      %v1880 = vpop.f32.mrb[0].mxu0
      %v1881 = vpop.f32.mrb[0].mxu0
      %v1882 = vadd.f32 0.0, %v1881
      %v1883 = vpop.f32.mrb[0].mxu0
      %1884 = vmatprep.mubr.bf16.mxu0 0
      %1885 = vmatmul.mubr.bf16.gmra.mrb[0].mxu0 %v1828
      %v1886 = vpop.f32.mrb[0].mxu0
      %v1887 = vadd.f32 0.0, %v1886
      %v1888 = vpop.f32.mrb[0].mxu0
      %v1889 = vpop.f32.mrb[0].mxu0
      %v1890 = vadd.f32 0.0, %v1889
      %v1891 = vpop.f32.mrb[0].mxu0
      %1892 = vmatprep.mubr.bf16.mxu0 0
      %1893 = vmatmul.mubr.bf16.gmra.mrb[0].mxu0 %v1831
      %v1894 = vpop.f32.mrb[0].mxu0
      %v1895 = vadd.f32 0.0, %v1894
      %v1896 = vpop.f32.mrb[0].mxu0
      %v1897 = vpop.f32.mrb[0].mxu0
      %v1898 = vadd.f32 0.0, %v1897
      %v1899 = vpop.f32.mrb[0].mxu0
      %1900 = vmatprep.mubr.bf16.mxu0 0
      %1901 = vmatmul.mubr.bf16.gmra.mrb[0].mxu0 %v1834
      %v1902 = vpop.f32.mrb[0].mxu0
      %v1903 = vadd.f32 0.0, %v1902
      %v1904 = vpop.f32.mrb[0].mxu0
      %v1905 = vpop.f32.mrb[0].mxu0
      %v1906 = vpop.f32.mrb[0].mxu0
      %1907 = vdwg.mxu0
      %v1908 = vadd.f32 %v1767, %v1871
      %v1909 = vadd.f32 %v1768, %v1874
      %v1910 = vadd.f32 %v1769, %v1879
      %v1911 = vadd.f32 %v1770, %v1882
      %v1912 = vadd.f32 %v1771, %v1887
      %v1913 = vadd.f32 %v1772, %v1890
      %v1914 = vadd.f32 %v1773, %v1895
      %v1915 = vadd.f32 %v1774, %v1898
      %v1916 = vadd.f32 %v1775, %v1903
      %v1917 = vld [vmem:[#allocation2] sm:$0xf0]
      %v1918 = vld [vmem:[#allocation2 + $0x8] sm:$0xff]
      %v1919 = vld [vmem:[#allocation2 + $0x10] sm:$0xff]
      %v1920 = vld [vmem:[#allocation2 + $0x18] sm:$0xff]
      %v1921 = vld [vmem:[#allocation2 + $0x20] sm:$0xff]
      %v1922 = vld [vmem:[#allocation2 + $0x28] sm:$0x1]
      %s1923 = scalar_lea.vmem %s4, 48
      %v1924 = vld [vmem:[%s1923] sm:$0xf]
      %v1925 = vld [vmem:[%s1923 + $0x4] sm:$0xf]
      %vm1926 = vsmask.f32 3328
      %v1928 = vshrl.u32 %v1917, 16
      %v1930 = vrot.slane %v1928, 4
      %v1931 = vshll.u32 %v1917, 16
      %v1933 = vrot.slane %v1931, 5
      %v1934 = vor.u32 %v1930, %v1933
      %v1936 = vshrl.u32 %v1918, 16
      %v1938 = vrot.slane %v1936, 4
      %v1939 = vshll.u32 %v1918, 16
      %v1941 = vrot.slane %v1939, 5
      %v1942 = vor.u32 %v1938, %v1941
      %v1943 = vsel %vm1926, %v1934, %v1942
      %v1945 = vshrl.u32 %v1919, 16
      %v1947 = vrot.slane %v1945, 4
      %v1948 = vshll.u32 %v1919, 16
      %v1950 = vrot.slane %v1948, 5
      %v1951 = vor.u32 %v1947, %v1950
      %v1952 = vsel %vm1926, %v1942, %v1951
      %v1954 = vshrl.u32 %v1920, 16
      %v1956 = vrot.slane %v1954, 4
      %v1957 = vshll.u32 %v1920, 16
      %v1959 = vrot.slane %v1957, 5
      %v1960 = vor.u32 %v1956, %v1959
      %v1961 = vsel %vm1926, %v1951, %v1960
      %v1963 = vshrl.u32 %v1921, 16
      %v1965 = vrot.slane %v1963, 4
      %v1966 = vshll.u32 %v1921, 16
      %v1968 = vrot.slane %v1966, 5
      %v1969 = vor.u32 %v1965, %v1968
      %v1970 = vsel %vm1926, %v1960, %v1969
      %v1972 = vshll.u32 %v1922, 16
      %v1974 = vrot.slane %v1972, 5
      %v1975 = vsel %vm1926, %v1969, %v1974
      %v1978 = vunpack.c.l.b16 %v1924
      %v1979 = vunpack.c.l.b16 %v1925
      %v1980 = vpack.c.b16 %v1979, %v1978
      %v1983 = vsel %vm1161, %v1943, 0
      %v1986 = vsel %vm1161, %v1952, 0
      %v1989 = vsel %vm1161, %v1961, 0
      %v1992 = vsel %vm1161, %v1970, 0
      %v1995 = vsel %vm1161, %v1975, 0
      %1997 = vmatprep.subr.bf16.mxu0 0
      %1998 = vmatpush1.bf16.msra.mxu0 %v1980
      %1999 = vmatprep.subr.bf16.mxu0 0
      %2000 = vmatpush1.bf16.msra.mxu0 0
      %2001 = vmatprep.subr.bf16.mxu0 0
      %2002 = vmatpush1.bf16.msra.mxu0 0
      %2003 = vmatprep.subr.bf16.mxu0 0
      %2004 = vmatpush1.bf16.msra.mxu0 0
      %2005 = vmatprep.subr.bf16.mxu0 0
      %2006 = vmatpush1.bf16.msra.mxu0 0
      %2007 = vmatprep.subr.bf16.mxu0 0
      %2008 = vmatpush1.bf16.msra.mxu0 0
      %2009 = vmatprep.subr.bf16.mxu0 0
      %2010 = vmatpush1.bf16.msra.mxu0 0
      %2011 = vmatprep.subr.bf16.mxu0 0
      %2012 = vmatpush1.bf16.msra.mxu0 0
      %2013 = vmatprep.subr.bf16.mxu0 0
      %2014 = vmatpush1.bf16.msra.mxu0 0
      %2015 = vmatprep.subr.bf16.mxu0 0
      %2016 = vmatpush1.bf16.msra.mxu0 0
      %2017 = vmatprep.subr.bf16.mxu0 0
      %2018 = vmatpush1.bf16.msra.mxu0 0
      %2019 = vmatprep.subr.bf16.mxu0 0
      %2020 = vmatpush1.bf16.msra.mxu0 0
      %2021 = vmatprep.subr.bf16.mxu0 0
      %2022 = vmatpush1.bf16.msra.mxu0 0
      %2023 = vmatprep.subr.bf16.mxu0 0
      %2024 = vmatpush1.bf16.msra.mxu0 0
      %2025 = vmatprep.subr.bf16.mxu0 0
      %2026 = vmatpush1.bf16.msra.mxu0 0
      %2027 = vmatprep.subr.bf16.mxu0 0
      %2028 = vmatpush1.bf16.msra.mxu0 0
      %2029 = vmatprep.mubr.bf16.mxu0 0
      %2030 = vmatmul.mubr.bf16.gmra.mrb[0].mxu0 %v1983
      %v2031 = vpop.f32.mrb[0].mxu0
      %v2032 = vadd.f32 0.0, %v2031
      %v2033 = vpop.f32.mrb[0].mxu0
      %v2034 = vpop.f32.mrb[0].mxu0
      %v2035 = vadd.f32 0.0, %v2034
      %v2036 = vpop.f32.mrb[0].mxu0
      %2037 = vmatprep.mubr.bf16.mxu0 0
      %2038 = vmatmul.mubr.bf16.gmra.mrb[0].mxu0 %v1986
      %v2039 = vpop.f32.mrb[0].mxu0
      %v2040 = vadd.f32 0.0, %v2039
      %v2041 = vpop.f32.mrb[0].mxu0
      %v2042 = vpop.f32.mrb[0].mxu0
      %v2043 = vadd.f32 0.0, %v2042
      %v2044 = vpop.f32.mrb[0].mxu0
      %2045 = vmatprep.mubr.bf16.mxu0 0
      %2046 = vmatmul.mubr.bf16.gmra.mrb[0].mxu0 %v1989
      %v2047 = vpop.f32.mrb[0].mxu0
      %v2048 = vadd.f32 0.0, %v2047
      %v2049 = vpop.f32.mrb[0].mxu0
      %v2050 = vpop.f32.mrb[0].mxu0
      %v2051 = vadd.f32 0.0, %v2050
      %v2052 = vpop.f32.mrb[0].mxu0
      %2053 = vmatprep.mubr.bf16.mxu0 0
      %2054 = vmatmul.mubr.bf16.gmra.mrb[0].mxu0 %v1992
      %v2055 = vpop.f32.mrb[0].mxu0
      %v2056 = vadd.f32 0.0, %v2055
      %v2057 = vpop.f32.mrb[0].mxu0
      %v2058 = vpop.f32.mrb[0].mxu0
      %v2059 = vadd.f32 0.0, %v2058
      %v2060 = vpop.f32.mrb[0].mxu0
      %2061 = vmatprep.mubr.bf16.mxu0 0
      %2062 = vmatmul.mubr.bf16.gmra.mrb[0].mxu0 %v1995
      %v2063 = vpop.f32.mrb[0].mxu0
      %v2064 = vadd.f32 0.0, %v2063
      %v2065 = vpop.f32.mrb[0].mxu0
      %v2066 = vpop.f32.mrb[0].mxu0
      %v2067 = vpop.f32.mrb[0].mxu0
      %2068 = vdwg.mxu0
      %v2069 = vadd.f32 %v1908, %v2032
      %v2070 = vadd.f32 %v1909, %v2035
      %v2071 = vadd.f32 %v1910, %v2040
      %v2072 = vadd.f32 %v1911, %v2043
      %v2073 = vadd.f32 %v1912, %v2048
      %v2074 = vadd.f32 %v1913, %v2051
      %v2075 = vadd.f32 %v1914, %v2056
      %v2076 = vadd.f32 %v1915, %v2059
      %v2077 = vadd.f32 %v1916, %v2064
      %v2078 = vld [vmem:[#allocation2 + $0x30] sm:$0xff]
      %v2079 = vld [vmem:[#allocation2 + $0x38] sm:$0xff]
      %v2080 = vld [vmem:[#allocation2 + $0x40] sm:$0xff]
      %v2081 = vld [vmem:[#allocation2 + $0x48] sm:$0xff]
      %v2082 = vld [vmem:[#allocation2 + $0x50] sm:$0x1f]
      %s2083 = scalar_lea.vmem %s4, 56
      %v2084 = vld [vmem:[%s2083] sm:$0xf]
      %v2085 = vld [vmem:[%s2083 + $0x4] sm:$0xf]
      %v2087 = vshrl.u32 %v2078, 16
      %v2089 = vshll.u32 %v2078, 16
      %v2091 = vrot.slane %v2089, 1
      %v2092 = vor.u32 %v2087, %v2091
      %v2094 = vshll.u32 %v2079, 16
      %v2096 = vrot.slane %v2094, 1
      %v2097 = vsel %vm1404, %v2092, %v2096
      %v2098 = vshrl.u32 %v2079, 16
      %v2100 = vor.u32 %v2098, %v2096
      %v2102 = vshll.u32 %v2080, 16
      %v2104 = vrot.slane %v2102, 1
      %v2105 = vsel %vm1404, %v2100, %v2104
      %v2106 = vshrl.u32 %v2080, 16
      %v2108 = vor.u32 %v2106, %v2104
      %v2110 = vshll.u32 %v2081, 16
      %v2112 = vrot.slane %v2110, 1
      %v2113 = vsel %vm1404, %v2108, %v2112
      %v2114 = vshrl.u32 %v2081, 16
      %v2116 = vor.u32 %v2114, %v2112
      %v2118 = vshll.u32 %v2082, 16
      %v2120 = vrot.slane %v2118, 1
      %v2121 = vsel %vm1404, %v2116, %v2120
      %v2122 = vshrl.u32 %v2082, 16
      %v2124 = vor.u32 %v2122, %v2120
      %v2127 = vunpack.c.l.b16 %v2084
      %v2128 = vunpack.c.l.b16 %v2085
      %v2129 = vpack.c.b16 %v2128, %v2127
      %v2132 = vsel %vm1161, %v2097, 0
      %v2135 = vsel %vm1161, %v2105, 0
      %v2138 = vsel %vm1161, %v2113, 0
      %v2141 = vsel %vm1161, %v2121, 0
      %v2144 = vsel %vm1161, %v2124, 0
      %2146 = vmatprep.subr.bf16.mxu0 0
      %2147 = vmatpush1.bf16.msra.mxu0 %v2129
      %2148 = vmatprep.subr.bf16.mxu0 0
      %2149 = vmatpush1.bf16.msra.mxu0 0
      %2150 = vmatprep.subr.bf16.mxu0 0
      %2151 = vmatpush1.bf16.msra.mxu0 0
      %2152 = vmatprep.subr.bf16.mxu0 0
      %2153 = vmatpush1.bf16.msra.mxu0 0
      %2154 = vmatprep.subr.bf16.mxu0 0
      %2155 = vmatpush1.bf16.msra.mxu0 0
      %2156 = vmatprep.subr.bf16.mxu0 0
      %2157 = vmatpush1.bf16.msra.mxu0 0
      %2158 = vmatprep.subr.bf16.mxu0 0
      %2159 = vmatpush1.bf16.msra.mxu0 0
      %2160 = vmatprep.subr.bf16.mxu0 0
      %2161 = vmatpush1.bf16.msra.mxu0 0
      %2162 = vmatprep.subr.bf16.mxu0 0
      %2163 = vmatpush1.bf16.msra.mxu0 0
      %2164 = vmatprep.subr.bf16.mxu0 0
      %2165 = vmatpush1.bf16.msra.mxu0 0
      %2166 = vmatprep.subr.bf16.mxu0 0
      %2167 = vmatpush1.bf16.msra.mxu0 0
      %2168 = vmatprep.subr.bf16.mxu0 0
      %2169 = vmatpush1.bf16.msra.mxu0 0
      %2170 = vmatprep.subr.bf16.mxu0 0
      %2171 = vmatpush1.bf16.msra.mxu0 0
      %2172 = vmatprep.subr.bf16.mxu0 0
      %2173 = vmatpush1.bf16.msra.mxu0 0
      %2174 = vmatprep.subr.bf16.mxu0 0
      %2175 = vmatpush1.bf16.msra.mxu0 0
      %2176 = vmatprep.subr.bf16.mxu0 0
      %2177 = vmatpush1.bf16.msra.mxu0 0
      %2178 = vmatprep.mubr.bf16.mxu0 0
      %2179 = vmatmul.mubr.bf16.gmra.mrb[0].mxu0 %v2132
      %v2180 = vpop.f32.mrb[0].mxu0
      %v2181 = vadd.f32 0.0, %v2180
      %v2182 = vpop.f32.mrb[0].mxu0
      %v2183 = vpop.f32.mrb[0].mxu0
      %v2184 = vadd.f32 0.0, %v2183
      %v2185 = vpop.f32.mrb[0].mxu0
      %2186 = vmatprep.mubr.bf16.mxu0 0
      %2187 = vmatmul.mubr.bf16.gmra.mrb[0].mxu0 %v2135
      %v2188 = vpop.f32.mrb[0].mxu0
      %v2189 = vadd.f32 0.0, %v2188
      %v2190 = vpop.f32.mrb[0].mxu0
      %v2191 = vpop.f32.mrb[0].mxu0
      %v2192 = vadd.f32 0.0, %v2191
      %v2193 = vpop.f32.mrb[0].mxu0
      %2194 = vmatprep.mubr.bf16.mxu0 0
      %2195 = vmatmul.mubr.bf16.gmra.mrb[0].mxu0 %v2138
      %v2196 = vpop.f32.mrb[0].mxu0
      %v2197 = vadd.f32 0.0, %v2196
      %v2198 = vpop.f32.mrb[0].mxu0
      %v2199 = vpop.f32.mrb[0].mxu0
      %v2200 = vadd.f32 0.0, %v2199
      %v2201 = vpop.f32.mrb[0].mxu0
      %2202 = vmatprep.mubr.bf16.mxu0 0
      %2203 = vmatmul.mubr.bf16.gmra.mrb[0].mxu0 %v2141
      %v2204 = vpop.f32.mrb[0].mxu0
      %v2205 = vadd.f32 0.0, %v2204
      %v2206 = vpop.f32.mrb[0].mxu0
      %v2207 = vpop.f32.mrb[0].mxu0
      %v2208 = vadd.f32 0.0, %v2207
      %v2209 = vpop.f32.mrb[0].mxu0
      %2210 = vmatprep.mubr.bf16.mxu0 0
      %2211 = vmatmul.mubr.bf16.gmra.mrb[0].mxu0 %v2144
      %v2212 = vpop.f32.mrb[0].mxu0
      %v2213 = vadd.f32 0.0, %v2212
      %v2214 = vpop.f32.mrb[0].mxu0
      %v2215 = vpop.f32.mrb[0].mxu0
      %v2216 = vpop.f32.mrb[0].mxu0
      %2217 = vdwg.mxu0
      %v2218 = vadd.f32 %v2069, %v2181
      %v2219 = vadd.f32 %v2070, %v2184
      %v2220 = vadd.f32 %v2071, %v2189
      %v2221 = vadd.f32 %v2072, %v2192
      %v2222 = vadd.f32 %v2073, %v2197
      %v2223 = vadd.f32 %v2074, %v2200
      %v2224 = vadd.f32 %v2075, %v2205
      %v2225 = vadd.f32 %v2076, %v2208
      %v2226 = vadd.f32 %v2077, %v2213
      %v2227 = vld [vmem:[#allocation2] sm:$0xe0]
      %s2228 = scalar_lea.vmem %s4, 64
      %v2229 = vld [vmem:[%s2228] sm:$0xf]
      %v2230 = vld [vmem:[%s2228 + $0x4] sm:$0xf]
      %vm2237 = vcmask 1042432
      %v2238 = vrot.slane %v2227, 5
      %v2239 = vrot.slane %v1918, 5
      %v2240 = vsel %vm2237, %v2238, %v2239
      %v2241 = vrot.slane %v1919, 5
      %v2242 = vsel %vm2237, %v2239, %v2241
      %v2243 = vrot.slane %v1920, 5
      %v2244 = vsel %vm2237, %v2241, %v2243
      %v2245 = vrot.slane %v1921, 5
      %v2246 = vsel %vm2237, %v2243, %v2245
      %v2247 = vrot.slane %v1922, 5
      %v2248 = vsel %vm2237, %v2245, %v2247
      %v2251 = vunpack.c.l.b16 %v2229
      %v2252 = vunpack.c.l.b16 %v2230
      %v2253 = vpack.c.b16 %v2252, %v2251
      %v2256 = vsel %vm1161, %v2240, 0
      %v2259 = vsel %vm1161, %v2242, 0
      %v2262 = vsel %vm1161, %v2244, 0
      %v2265 = vsel %vm1161, %v2246, 0
      %v2268 = vsel %vm1161, %v2248, 0
      %2270 = vmatprep.subr.bf16.mxu0 0
      %2271 = vmatpush1.bf16.msra.mxu0 %v2253
      %2272 = vmatprep.subr.bf16.mxu0 0
      %2273 = vmatpush1.bf16.msra.mxu0 0
      %2274 = vmatprep.subr.bf16.mxu0 0
      %2275 = vmatpush1.bf16.msra.mxu0 0
      %2276 = vmatprep.subr.bf16.mxu0 0
      %2277 = vmatpush1.bf16.msra.mxu0 0
      %2278 = vmatprep.subr.bf16.mxu0 0
      %2279 = vmatpush1.bf16.msra.mxu0 0
      %2280 = vmatprep.subr.bf16.mxu0 0
      %2281 = vmatpush1.bf16.msra.mxu0 0
      %2282 = vmatprep.subr.bf16.mxu0 0
      %2283 = vmatpush1.bf16.msra.mxu0 0
      %2284 = vmatprep.subr.bf16.mxu0 0
      %2285 = vmatpush1.bf16.msra.mxu0 0
      %2286 = vmatprep.subr.bf16.mxu0 0
      %2287 = vmatpush1.bf16.msra.mxu0 0
      %2288 = vmatprep.subr.bf16.mxu0 0
      %2289 = vmatpush1.bf16.msra.mxu0 0
      %2290 = vmatprep.subr.bf16.mxu0 0
      %2291 = vmatpush1.bf16.msra.mxu0 0
      %2292 = vmatprep.subr.bf16.mxu0 0
      %2293 = vmatpush1.bf16.msra.mxu0 0
      %2294 = vmatprep.subr.bf16.mxu0 0
      %2295 = vmatpush1.bf16.msra.mxu0 0
      %2296 = vmatprep.subr.bf16.mxu0 0
      %2297 = vmatpush1.bf16.msra.mxu0 0
      %2298 = vmatprep.subr.bf16.mxu0 0
      %2299 = vmatpush1.bf16.msra.mxu0 0
      %2300 = vmatprep.subr.bf16.mxu0 0
      %2301 = vmatpush1.bf16.msra.mxu0 0
      %2302 = vmatprep.mubr.bf16.mxu0 0
      %2303 = vmatmul.mubr.bf16.gmra.mrb[0].mxu0 %v2256
      %v2304 = vpop.f32.mrb[0].mxu0
      %v2305 = vadd.f32 0.0, %v2304
      %v2306 = vpop.f32.mrb[0].mxu0
      %v2307 = vpop.f32.mrb[0].mxu0
      %v2308 = vadd.f32 0.0, %v2307
      %v2309 = vpop.f32.mrb[0].mxu0
      %2310 = vmatprep.mubr.bf16.mxu0 0
      %2311 = vmatmul.mubr.bf16.gmra.mrb[0].mxu0 %v2259
      %v2312 = vpop.f32.mrb[0].mxu0
      %v2313 = vadd.f32 0.0, %v2312
      %v2314 = vpop.f32.mrb[0].mxu0
      %v2315 = vpop.f32.mrb[0].mxu0
      %v2316 = vadd.f32 0.0, %v2315
      %v2317 = vpop.f32.mrb[0].mxu0
      %2318 = vmatprep.mubr.bf16.mxu0 0
      %2319 = vmatmul.mubr.bf16.gmra.mrb[0].mxu0 %v2262
      %v2320 = vpop.f32.mrb[0].mxu0
      %v2321 = vadd.f32 0.0, %v2320
      %v2322 = vpop.f32.mrb[0].mxu0
      %v2323 = vpop.f32.mrb[0].mxu0
      %v2324 = vadd.f32 0.0, %v2323
      %v2325 = vpop.f32.mrb[0].mxu0
      %2326 = vmatprep.mubr.bf16.mxu0 0
      %2327 = vmatmul.mubr.bf16.gmra.mrb[0].mxu0 %v2265
      %v2328 = vpop.f32.mrb[0].mxu0
      %v2329 = vadd.f32 0.0, %v2328
      %v2330 = vpop.f32.mrb[0].mxu0
      %v2331 = vpop.f32.mrb[0].mxu0
      %v2332 = vadd.f32 0.0, %v2331
      %v2333 = vpop.f32.mrb[0].mxu0
      %2334 = vmatprep.mubr.bf16.mxu0 0
      %2335 = vmatmul.mubr.bf16.gmra.mrb[0].mxu0 %v2268
      %v2336 = vpop.f32.mrb[0].mxu0
      %v2337 = vadd.f32 0.0, %v2336
      %v2338 = vpop.f32.mrb[0].mxu0
      %v2339 = vpop.f32.mrb[0].mxu0
      %v2340 = vpop.f32.mrb[0].mxu0
      %2341 = vdwg.mxu0
      %v2342 = vadd.f32 %v2218, %v2305
      %v2343 = vadd.f32 %v2219, %v2308
      %v2344 = vadd.f32 %v2220, %v2313
      %v2345 = vadd.f32 %v2221, %v2316
      %v2346 = vadd.f32 %v2222, %v2321
      %v2347 = vadd.f32 %v2223, %v2324
      %v2348 = vadd.f32 %v2224, %v2329
      %v2349 = vadd.f32 %v2225, %v2332
      %v2350 = vadd.f32 %v2226, %v2337
      %v2351 = vld [vmem:[%s5] sm:$0x1]
      %v2353 = vlaneseq
      %v2354 = vshrl.u32 %v2353, 7
      %v2355 = vsub.s32 0, %v2354
      %v2356 = vrot.slane %v2351, %v2355
      %v2358 = vadd.f32 %v2342, %v2356
      %v2359 = vadd.f32 %v2343, %v2356
      %v2360 = vadd.f32 %v2344, %v2356
      %v2361 = vadd.f32 %v2345, %v2356
      %v2362 = vadd.f32 %v2346, %v2356
      %v2363 = vadd.f32 %v2347, %v2356
      %v2364 = vadd.f32 %v2348, %v2356
      %v2365 = vadd.f32 %v2349, %v2356
      %v2366 = vadd.f32 %v2350, %v2356
      %v2367 = vmax.f32 %v2358, 0.0
      %v2368 = vmax.f32 %v2359, 0.0
      %v2369 = vmax.f32 %v2360, 0.0
      %v2370 = vmax.f32 %v2361, 0.0
      %v2371 = vmax.f32 %v2362, 0.0
      %v2372 = vmax.f32 %v2363, 0.0
      %v2373 = vmax.f32 %v2364, 0.0
      %v2374 = vmax.f32 %v2365, 0.0
      %v2375 = vmax.f32 %v2366, 0.0
      %v2376 = vpack.c.bf16 %v2368, %v2367
      %v2377 = vpack.c.bf16 %v2370, %v2369
      %v2378 = vpack.c.bf16 %v2372, %v2371
      %v2379 = vpack.c.bf16 %v2374, %v2373
      %v2380 = vpack.c.bf16 %v2375, %v2375
      %v2381 = vld [vmem:[%s6] sm:$0xf]
      %v2382 = vld [vmem:[%s6 + $0x4] sm:$0xf]
      %v2383 = vld [vmem:[%s327 + $0x84] sm:$0xf]
      %v2384 = vld [vmem:[%s327 + $0x88] sm:$0xf]
      %v2385 = vld [vmem:[%s327 + $0x8c] sm:$0xf]
      %v2386 = vld [vmem:[%s327 + $0x90] sm:$0xf]
      %v2387 = vld [vmem:[%s327 + $0x94] sm:$0xf]
      %v2388 = vld [vmem:[%s327 + $0x98] sm:$0xf]
      %v2389 = vld [vmem:[%s327 + $0x9c] sm:$0xf]
      %v2390 = vld [vmem:[%s327 + $0xa0] sm:$0xf]
      %v2391 = vld [vmem:[%s327 + $0xa4] sm:$0xf]
      %v2392 = vld [vmem:[%s8] sm:$0xf]
      %v2393 = vld [vmem:[%s8 + $0x4] sm:$0xf]
      %v2394 = vld [vmem:[%s8 + $0x8] sm:$0xf]
      %v2395 = vld [vmem:[%s8 + $0xc] sm:$0xf]
      %v2405 = vunpack.c.l.b16 %v2383
      %v2406 = vunpack.c.l.b16 %v2384
      %v2407 = vunpack.c.l.b16 %v2385
      %v2408 = vunpack.c.l.b16 %v2386
      %v2409 = vunpack.c.l.b16 %v2387
      %v2410 = vunpack.c.l.b16 %v2388
      %v2411 = vunpack.c.l.b16 %v2389
      %v2412 = vunpack.c.l.b16 %v2390
      %v2413 = vunpack.c.l.b16 %v2391
      %v2414 = vpack.c.b16 %v2406, %v2405
      %v2415 = vpack.c.b16 %v2408, %v2407
      %v2416 = vpack.c.b16 %v2410, %v2409
      %v2417 = vpack.c.b16 %v2412, %v2411
      %v2418 = vpack.c.b16 %v2413, %v2413
      %v2423 = vunpack.c.l.b16 %v2392
      %v2424 = vunpack.c.l.b16 %v2393
      %v2425 = vunpack.c.l.b16 %v2394
      %v2426 = vunpack.c.l.b16 %v2395
      %v2427 = vpack.c.b16 %v2424, %v2423
      %v2428 = vpack.c.b16 %v2426, %v2425
      %v2432 = vsel %vm511, %v2414, 0
      %v2435 = vsel %vm511, %v2415, 0
      %v2438 = vsel %vm511, %v2416, 0
      %v2441 = vsel %vm511, %v2417, 0
      %v2444 = vsel %vm511, %v2418, 0
      %2446 = vmatprep.subr.bf16.mxu0 0
      %2447 = vmatpush1.bf16.msra.mxu0 %v2427
      %2448 = vmatprep.subr.bf16.mxu0 0
      %2449 = vmatpush1.bf16.msra.mxu0 %v2428
      %2450 = vmatprep.subr.bf16.mxu0 0
      %2451 = vmatpush1.bf16.msra.mxu0 0
      %2452 = vmatprep.subr.bf16.mxu0 0
      %2453 = vmatpush1.bf16.msra.mxu0 0
      %2454 = vmatprep.subr.bf16.mxu0 0
      %2455 = vmatpush1.bf16.msra.mxu0 0
      %2456 = vmatprep.subr.bf16.mxu0 0
      %2457 = vmatpush1.bf16.msra.mxu0 0
      %2458 = vmatprep.subr.bf16.mxu0 0
      %2459 = vmatpush1.bf16.msra.mxu0 0
      %2460 = vmatprep.subr.bf16.mxu0 0
      %2461 = vmatpush1.bf16.msra.mxu0 0
      %2462 = vmatprep.subr.bf16.mxu0 0
      %2463 = vmatpush1.bf16.msra.mxu0 0
      %2464 = vmatprep.subr.bf16.mxu0 0
      %2465 = vmatpush1.bf16.msra.mxu0 0
      %2466 = vmatprep.subr.bf16.mxu0 0
      %2467 = vmatpush1.bf16.msra.mxu0 0
      %2468 = vmatprep.subr.bf16.mxu0 0
      %2469 = vmatpush1.bf16.msra.mxu0 0
      %2470 = vmatprep.subr.bf16.mxu0 0
      %2471 = vmatpush1.bf16.msra.mxu0 0
      %2472 = vmatprep.subr.bf16.mxu0 0
      %2473 = vmatpush1.bf16.msra.mxu0 0
      %2474 = vmatprep.subr.bf16.mxu0 0
      %2475 = vmatpush1.bf16.msra.mxu0 0
      %2476 = vmatprep.subr.bf16.mxu0 0
      %2477 = vmatpush1.bf16.msra.mxu0 0
      %2478 = vmatprep.mubr.bf16.mxu0 0
      %2479 = vmatmul.mubr.bf16.gmra.mrb[0].mxu0 %v2432
      %v2480 = vpop.f32.mrb[0].mxu0
      %v2481 = vadd.f32 0.0, %v2480
      %v2482 = vpop.f32.mrb[0].mxu0
      %v2483 = vpop.f32.mrb[0].mxu0
      %v2484 = vadd.f32 0.0, %v2483
      %v2485 = vpop.f32.mrb[0].mxu0
      %2486 = vmatprep.mubr.bf16.mxu0 0
      %2487 = vmatmul.mubr.bf16.gmra.mrb[0].mxu0 %v2435
      %v2488 = vpop.f32.mrb[0].mxu0
      %v2489 = vadd.f32 0.0, %v2488
      %v2490 = vpop.f32.mrb[0].mxu0
      %v2491 = vpop.f32.mrb[0].mxu0
      %v2492 = vadd.f32 0.0, %v2491
      %v2493 = vpop.f32.mrb[0].mxu0
      %2494 = vmatprep.mubr.bf16.mxu0 0
      %2495 = vmatmul.mubr.bf16.gmra.mrb[0].mxu0 %v2438
      %v2496 = vpop.f32.mrb[0].mxu0
      %v2497 = vadd.f32 0.0, %v2496
      %v2498 = vpop.f32.mrb[0].mxu0
      %v2499 = vpop.f32.mrb[0].mxu0
      %v2500 = vadd.f32 0.0, %v2499
      %v2501 = vpop.f32.mrb[0].mxu0
      %2502 = vmatprep.mubr.bf16.mxu0 0
      %2503 = vmatmul.mubr.bf16.gmra.mrb[0].mxu0 %v2441
      %v2504 = vpop.f32.mrb[0].mxu0
      %v2505 = vadd.f32 0.0, %v2504
      %v2506 = vpop.f32.mrb[0].mxu0
      %v2507 = vpop.f32.mrb[0].mxu0
      %v2508 = vadd.f32 0.0, %v2507
      %v2509 = vpop.f32.mrb[0].mxu0
      %2510 = vmatprep.mubr.bf16.mxu0 0
      %2511 = vmatmul.mubr.bf16.gmra.mrb[0].mxu0 %v2444
      %v2512 = vpop.f32.mrb[0].mxu0
      %v2513 = vadd.f32 0.0, %v2512
      %v2514 = vpop.f32.mrb[0].mxu0
      %v2515 = vpop.f32.mrb[0].mxu0
      %v2516 = vpop.f32.mrb[0].mxu0
      %2517 = vdwg.mxu0
      %v2520 = vunpack.c.l.b16 %v2381
      %v2521 = vunpack.c.l.b16 %v2382
      %v2522 = vpack.c.b16 %v2521, %v2520
      %v2525 = vsel %vm1161, %v2376, 0
      %v2528 = vsel %vm1161, %v2377, 0
      %v2531 = vsel %vm1161, %v2378, 0
      %v2534 = vsel %vm1161, %v2379, 0
      %v2537 = vsel %vm1161, %v2380, 0
      %2539 = vmatprep.subr.bf16.mxu0 0
      %2540 = vmatpush1.bf16.msra.mxu0 %v2522
      %2541 = vmatprep.subr.bf16.mxu0 0
      %2542 = vmatpush1.bf16.msra.mxu0 0
      %2543 = vmatprep.subr.bf16.mxu0 0
      %2544 = vmatpush1.bf16.msra.mxu0 0
      %2545 = vmatprep.subr.bf16.mxu0 0
      %2546 = vmatpush1.bf16.msra.mxu0 0
      %2547 = vmatprep.subr.bf16.mxu0 0
      %2548 = vmatpush1.bf16.msra.mxu0 0
      %2549 = vmatprep.subr.bf16.mxu0 0
      %2550 = vmatpush1.bf16.msra.mxu0 0
      %2551 = vmatprep.subr.bf16.mxu0 0
      %2552 = vmatpush1.bf16.msra.mxu0 0
      %2553 = vmatprep.subr.bf16.mxu0 0
      %2554 = vmatpush1.bf16.msra.mxu0 0
      %2555 = vmatprep.subr.bf16.mxu0 0
      %2556 = vmatpush1.bf16.msra.mxu0 0
      %2557 = vmatprep.subr.bf16.mxu0 0
      %2558 = vmatpush1.bf16.msra.mxu0 0
      %2559 = vmatprep.subr.bf16.mxu0 0
      %2560 = vmatpush1.bf16.msra.mxu0 0
      %2561 = vmatprep.subr.bf16.mxu0 0
      %2562 = vmatpush1.bf16.msra.mxu0 0
      %2563 = vmatprep.subr.bf16.mxu0 0
      %2564 = vmatpush1.bf16.msra.mxu0 0
      %2565 = vmatprep.subr.bf16.mxu0 0
      %2566 = vmatpush1.bf16.msra.mxu0 0
      %2567 = vmatprep.subr.bf16.mxu0 0
      %2568 = vmatpush1.bf16.msra.mxu0 0
      %2569 = vmatprep.subr.bf16.mxu0 0
      %2570 = vmatpush1.bf16.msra.mxu0 0
      %2571 = vmatprep.mubr.bf16.mxu0 0
      %2572 = vmatmul.mubr.bf16.gmra.mrb[0].mxu0 %v2525
      %v2573 = vpop.f32.mrb[0].mxu0
      %v2574 = vadd.f32 %v2481, %v2573
      %v2575 = vpop.f32.mrb[0].mxu0
      %v2576 = vpop.f32.mrb[0].mxu0
      %v2577 = vadd.f32 %v2484, %v2576
      %v2578 = vpop.f32.mrb[0].mxu0
      %2579 = vmatprep.mubr.bf16.mxu0 0
      %2580 = vmatmul.mubr.bf16.gmra.mrb[0].mxu0 %v2528
      %v2581 = vpop.f32.mrb[0].mxu0
      %v2582 = vadd.f32 %v2489, %v2581
      %v2583 = vpop.f32.mrb[0].mxu0
      %v2584 = vpop.f32.mrb[0].mxu0
      %v2585 = vadd.f32 %v2492, %v2584
      %v2586 = vpop.f32.mrb[0].mxu0
      %2587 = vmatprep.mubr.bf16.mxu0 0
      %2588 = vmatmul.mubr.bf16.gmra.mrb[0].mxu0 %v2531
      %v2589 = vpop.f32.mrb[0].mxu0
      %v2590 = vadd.f32 %v2497, %v2589
      %v2591 = vpop.f32.mrb[0].mxu0
      %v2592 = vpop.f32.mrb[0].mxu0
      %v2593 = vadd.f32 %v2500, %v2592
      %v2594 = vpop.f32.mrb[0].mxu0
      %2595 = vmatprep.mubr.bf16.mxu0 0
      %2596 = vmatmul.mubr.bf16.gmra.mrb[0].mxu0 %v2534
      %v2597 = vpop.f32.mrb[0].mxu0
      %v2598 = vadd.f32 %v2505, %v2597
      %v2599 = vpop.f32.mrb[0].mxu0
      %v2600 = vpop.f32.mrb[0].mxu0
      %v2601 = vadd.f32 %v2508, %v2600
      %v2602 = vpop.f32.mrb[0].mxu0
      %2603 = vmatprep.mubr.bf16.mxu0 0
      %2604 = vmatmul.mubr.bf16.gmra.mrb[0].mxu0 %v2537
      %v2605 = vpop.f32.mrb[0].mxu0
      %v2606 = vadd.f32 %v2513, %v2605
      %v2607 = vpop.f32.mrb[0].mxu0
      %v2608 = vpop.f32.mrb[0].mxu0
      %v2609 = vpop.f32.mrb[0].mxu0
      %2610 = vdwg.mxu0
      %v2611 = vld [vmem:[%s7] sm:$0x1]
      %v2613 = vlaneseq
      %v2614 = vshrl.u32 %v2613, 7
      %v2615 = vsub.s32 0, %v2614
      %v2616 = vrot.slane %v2611, %v2615
      %v2618 = vadd.f32 %v2574, %v2616
      %v2619 = vadd.f32 %v2577, %v2616
      %v2620 = vadd.f32 %v2582, %v2616
      %v2621 = vadd.f32 %v2585, %v2616
      %v2622 = vadd.f32 %v2590, %v2616
      %v2623 = vadd.f32 %v2593, %v2616
      %v2624 = vadd.f32 %v2598, %v2616
      %v2625 = vadd.f32 %v2601, %v2616
      %v2626 = vadd.f32 %v2606, %v2616
      %v2627 = vmax.f32 %v2618, 0.0
      %v2628 = vmax.f32 %v2619, 0.0
      %v2629 = vmax.f32 %v2620, 0.0
      %v2630 = vmax.f32 %v2621, 0.0
      %v2631 = vmax.f32 %v2622, 0.0
      %v2632 = vmax.f32 %v2623, 0.0
      %v2633 = vmax.f32 %v2624, 0.0
      %v2634 = vmax.f32 %v2625, 0.0
      %v2635 = vmax.f32 %v2626, 0.0
      %v2636 = vpack.c.bf16 %v2628, %v2627
      %v2637 = vpack.c.bf16 %v2630, %v2629
      %v2638 = vpack.c.bf16 %v2632, %v2631
      %v2639 = vpack.c.bf16 %v2634, %v2633
      %v2640 = vpack.c.bf16 %v2635, %v2635
      %v2646 = vunpack.c.l.b16 %v2636
      %v2647 = vunpack.c.h.b16 %v2636
      %v2648 = vunpack.c.l.b16 %v2637
      %v2649 = vunpack.c.h.b16 %v2637
      %v2650 = vunpack.c.l.b16 %v2638
      %v2651 = vunpack.c.h.b16 %v2638
      %v2652 = vunpack.c.l.b16 %v2639
      %v2653 = vunpack.c.h.b16 %v2639
      %v2654 = vunpack.c.l.b16 %v2640
      %v2655 = vpack.c.b16 %v2646, %v2646
      %v2656 = vpack.c.b16 %v2647, %v2647
      %v2657 = vpack.c.b16 %v2648, %v2648
      %v2658 = vpack.c.b16 %v2649, %v2649
      %v2659 = vpack.c.b16 %v2650, %v2650
      %v2660 = vpack.c.b16 %v2651, %v2651
      %v2661 = vpack.c.b16 %v2652, %v2652
      %v2662 = vpack.c.b16 %v2653, %v2653
      %v2663 = vpack.c.b16 %v2654, %v2654
      %vm2673 = vcmask 519168
      %2674 = vst.msk [vmem:[%s332] sm:$0xf] %vm2673, %v2655
      %2675 = vst.msk [vmem:[%s332 + $0x4] sm:$0xf] %vm2673, %v2656
      %2676 = vst.msk [vmem:[%s332 + $0x8] sm:$0xf] %vm2673, %v2657
      %2677 = vst.msk [vmem:[%s332 + $0xc] sm:$0xf] %vm2673, %v2658
      %2678 = vst.msk [vmem:[%s332 + $0x10] sm:$0xf] %vm2673, %v2659
      %2679 = vst.msk [vmem:[%s332 + $0x14] sm:$0xf] %vm2673, %v2660
      %2680 = vst.msk [vmem:[%s332 + $0x18] sm:$0xf] %vm2673, %v2661
      %2681 = vst.msk [vmem:[%s332 + $0x1c] sm:$0xf] %vm2673, %v2662
      %2682 = vst.msk [vmem:[%s332 + $0x20] sm:$0xf] %vm2673, %v2663
      %p2683 = scmp.lt.s32.totalorder %s20, 1
      %s2684 = scalar_select %p2683, %s20, 1
      %s2685 = smul.addr %s2684, 9
      %s2686 = smul.addr %s2685, 4
      %s2687 = scalar_lea.vmem %s9, %s2686
      // Predicated region
      $region57: #{bottleneck_forward.1} parent=55 // pred_check
        %p2688 = pneg %p232
      $region58: #{bottleneck_forward.1} parent=55 // pred_check_branch
        %2690 = sbr.rel (%p2688) target = $region60
      $region59: #{bottleneck_forward.1} parent=55 // pred_region
        _
      $region60: #{bottleneck_forward.1} parent=55 // pred_fallthru
        _
    $region56: #{bottleneck_forward.1} parent=5 // pred_fallthru
      _
    %p2691 = scmp.le.s32.totalorder 2, %s15
    // Predicated region
    $region61: #{bottleneck_forward.1} parent=5 // pred_check
      %p2692 = pneg %p2691
    $region62: #{bottleneck_forward.1} parent=5 // pred_check_branch
      %2694 = sbr.rel (%p2692) target = $region64
    $region63: #{bottleneck_forward.1} parent=5 // pred_region
      %s2695 = ssub.s32 %s15, 2
      // Predicated region
      $region65: #{bottleneck_forward.1} parent=63 // pred_check
        %p2696 = pneg %p238
      $region66: #{bottleneck_forward.1} parent=63 // pred_check_branch
        %2698 = sbr.rel (%p2696) target = $region68
      $region67: #{bottleneck_forward.1} parent=63 // pred_region
        %p2699 = scmp.lt.s32.totalorder %s21, 1
        %s2700 = scalar_select %p2699, %s21, 1
        %s2701 = smul.addr %s2700, 9
        %s2702 = smul.addr %s2701, 4
        %s2703 = scalar_lea.vmem %s9, %s2702
      $region68: #{bottleneck_forward.1} parent=63 // pred_fallthru
        _
    $region64: #{bottleneck_forward.1} parent=5 // pred_fallthru
      _
  $region6: #{bottleneck_forward.1} parent=0 // loop_footer
    %s19 = sadd.s32 1, %s15
  $region7: #{bottleneck_forward.1} parent=0 // loop_footer_branch
    %14 = sbr.rel target = $region3
  $region8: #{bottleneck_forward.1} parent=0 // loop_exit
    _

</llo_original>
